<compile_context>
chip_gen: v7x
topology: tpu7x:2x2x1
jax: 0.10.0
libtpu: 0.0.40
codegen_flags: <defaults>
</compile_context>

<pallas_src>
import functools

import jax
import jax.numpy as jnp
from jax import lax
from jax.experimental import pallas as pl
from jax.experimental.pallas import tpu as pltpu

K = 7              # conv kernel size
P = (K - 1) // 2   # padding = 3


def spatial_gate_kernel(x_ref, w_ref, bn_ref, o_ref, *, H, W):
    """One (NB, C, H*W) batch block per grid step.

    x_ref : VMEM (NB, C, H*W)  input block, native dtype, lane-dense
    w_ref : SMEM (2*K*K,)      conv weights with BN scale & mean's 1/C folded in
    bn_ref: SMEM (1,)          BN shift
    o_ref : VMEM (NB, C, H*W)  gated output block
    """
    HW = H * W
    xb = x_ref[...]                                    # native dtype, no full upcast
    NB = xb.shape[0]

    # --- ChannelPool over C (axis 1). max is exact in any dtype; the sum ----
    #     accumulates in f32 (the mean's 1/C is folded into the weights). ----
    cmax = jnp.max(xb, axis=1).astype(jnp.float32)             # (NB, HW)
    csum = jnp.sum(xb, axis=1, dtype=jnp.float32)              # (NB, HW)

    # --- boundary masks for the roll-based conv taps -------------------------
    # Row validity is a contiguous flat-index range (no div needed); column
    # validity uses col = i & (W-1) for power-of-two W.
    pos = lax.broadcasted_iota(jnp.int32, (1, HW), 1)          # flat pixel index
    if W & (W - 1) == 0:
        col = pos & (W - 1)
    else:
        col = pos % W      # TODO(synk): general-W path uses vector s32 rem
    row_ok, col_ok = {}, {}
    for d in range(-P, P + 1):
        if d > 0:
            row_ok[d] = pos < (H - d) * W
            col_ok[d] = col < (W - d)
        elif d < 0:
            row_ok[d] = pos >= (-d) * W
            col_ok[d] = col >= -d
        else:
            row_ok[d] = None                                   # always valid
            col_ok[d] = None

    def shift_flat(v, flat_shift, mask):
        # out[i] = v[i + flat_shift] where the source pixel is in-bounds, else 0.
        rolled = v if flat_shift == 0 else pltpu.roll(
            v, shift=(-flat_shift) % HW, axis=1)
        return rolled if mask is None else jnp.where(mask, rolled, 0.0)

    # --- 7x7 conv (2 -> 1 channel), fully unrolled; acc starts at BN shift ---
    acc = jnp.full((NB, HW), bn_ref[0], dtype=jnp.float32)
    for c, cmap in enumerate((cmax, csum)):
        for iy in range(K):
            dy = iy - P
            base = shift_flat(cmap, dy * W, row_ok[dy])        # row shift + mask
            for ix in range(K):
                dx = ix - P
                tap = shift_flat(base, dx, col_ok[dx])         # col shift + mask
                acc = acc + w_ref[c * K * K + iy * K + ix] * tap

    # --- sigmoid gate (EUP) and gating multiply in the input dtype -----------
    gate = jax.nn.sigmoid(acc)                                 # (NB, HW) f32
    scale = gate[:, None, :].astype(xb.dtype)                  # (NB, 1, HW)
    o_ref[...] = (xb * scale).astype(o_ref.dtype)              # lane-dense store


def _pick_batch_block(n, per_batch_bytes, target_bytes=2 << 20):
    """Largest batch block that (a) divides N, (b) keeps a block under ~2 MiB so
    the double-buffered in+out pipeline fits every chip generation's VMEM
    (incl. v7x's 64 MiB), and (c) leaves >= 2 grid steps when N allows so both
    v7x TensorCores get work."""
    divisors = [d for d in range(1, n + 1) if n % d == 0]
    fitting = [d for d in divisors if d * per_batch_bytes <= target_bytes] or [1]
    two_step = [d for d in fitting if n // d >= 2]
    return max(two_step) if two_step else max(fitting)


def spatial_gate(x, conv_w, bn_scale, bn_shift):
    """x: (N, C, H, W).  conv_w: (1, 2, 7, 7).  bn_scale/bn_shift: scalars."""
    N, C, H, W = x.shape
    HW = H * W

    # Fold BN scale into the conv weights and the ChannelPool mean's 1/C into
    # the mean-channel weights (kernel then only needs the channel sum + shift).
    w_eff = conv_w.reshape(2, K, K).astype(jnp.float32) * bn_scale
    w_eff = w_eff * jnp.array([1.0, 1.0 / C], jnp.float32)[:, None, None]
    w_flat = w_eff.reshape(-1)                                 # (2*K*K,)
    shift = jnp.asarray(bn_shift, jnp.float32).reshape((1,))   # (1,)

    # Lane-dense view: the last (lane) dim is H*W.
    x_flat = x.reshape(N, C, HW)

    nb = _pick_batch_block(N, C * HW * x.dtype.itemsize)
    grid = (N // nb,)

    out_flat = pl.pallas_call(
        functools.partial(spatial_gate_kernel, H=H, W=W),
        out_shape=jax.ShapeDtypeStruct((N, C, HW), x.dtype),
        grid=grid,
        in_specs=[
            pl.BlockSpec((nb, C, HW), lambda n: (n, 0, 0)),
            pl.BlockSpec(memory_space=pltpu.MemorySpace.SMEM),
            pl.BlockSpec(memory_space=pltpu.MemorySpace.SMEM),
        ],
        out_specs=pl.BlockSpec((nb, C, HW), lambda n: (n, 0, 0)),
        compiler_params=pltpu.CompilerParams(
            dimension_semantics=("parallel",),
            vmem_limit_bytes=32 * 1024 * 1024,
        ),
    )(x_flat, w_flat, shift)

    return out_flat.reshape(N, C, H, W)


def spatial_gate_reference(x, conv_w, bn_scale, bn_shift):
    """Pure-JAX reference (same math as the PyTorch module, eval-mode BN)."""
    cmax = jnp.max(x, axis=1, keepdims=True)
    cmean = jnp.mean(x, axis=1, keepdims=True)
    comp = jnp.concatenate([cmax, cmean], axis=1)              # (N, 2, H, W)
    conv = lax.conv_general_dilated(
        comp, conv_w, window_strides=(1, 1), padding=[(P, P), (P, P)],
        dimension_numbers=("NCHW", "OIHW", "NCHW"))            # (N, 1, H, W)
    y = conv * bn_scale + bn_shift
    return x * jax.nn.sigmoid(y)


if __name__ == "__main__":
    key = jax.random.PRNGKey(0)
    kx, kw = jax.random.split(key)

    N, C, H, W = 2, 4, 16, 16
    x = jax.random.normal(kx, (N, C, H, W), dtype=jnp.float32)

    # Conv2d(2, 1, 7, bias=False) weight — deterministic synthetic init.
    conv_w = jax.random.normal(kw, (1, 2, K, K), dtype=jnp.float32) * 0.1

    # BatchNorm2d(1) default params, eval semantics: gamma=1, beta=0,
    # running_mean=0, running_var=1, eps=1e-5  ->  fold to scale/shift.
    eps = 1e-5
    gamma, beta = jnp.float32(1.0), jnp.float32(0.0)
    run_mean, run_var = jnp.float32(0.0), jnp.float32(1.0)
    bn_scale = gamma / jnp.sqrt(run_var + eps)
    bn_shift = beta - run_mean * bn_scale

    out = jax.block_until_ready(spatial_gate(x, conv_w, bn_scale, bn_shift))

    ref = spatial_gate_reference(x, conv_w, bn_scale, bn_shift)
    assert out.shape == (N, C, H, W)
    assert jnp.allclose(out, ref, atol=1e-5, rtol=1e-5), "mismatch vs reference"

    print("KERNEL_OK")
</pallas_src>

<mosaic_0001>
module attributes {stable_mosaic.version = 11 : i64} {
  func.func @spatial_gate_kernel(%arg0: i32, %arg1: memref<1x4x256xf32, #tpu.memory_space<vmem>>, %arg2: memref<98xf32, #tpu.memory_space<smem>>, %arg3: memref<1xf32, #tpu.memory_space<smem>>, %arg4: memref<1x4x256xf32, #tpu.memory_space<vmem>>) attributes {dimension_semantics = [#tpu.dimension_semantics<parallel>], iteration_bounds = array<i64: 2>, scalar_prefetch = 0 : i64, scratch_operands = 0 : i64, tpu.core_type = #tpu.core_type<tc>, window_params = [{transform_indices = @transform_0, window_bounds = array<i64: 1, 4, 256>}, {transform_indices = @transform_1, window_bounds = array<i64: 98>}, {transform_indices = @transform_2, window_bounds = array<i64: 1>}, {transform_indices = @transform_3, window_bounds = array<i64: 1, 4, 256>}]} {
    %c0 = arith.constant 0 : index
    %c0_0 = arith.constant 0 : index
    %c0_1 = arith.constant 0 : index
    %0 = vector.load %arg1[%c0, %c0_0, %c0_1] : memref<1x4x256xf32, #tpu.memory_space<vmem>>, vector<1x4x256xf32>
    %cst = arith.constant dense<0xFF800000> : vector<1x256xf32>
    %1 = vector.multi_reduction <maximumf>, %0, %cst [1] : vector<1x4x256xf32> to vector<1x256xf32>
    %cst_2 = arith.constant dense<0.000000e+00> : vector<1x256xf32>
    %2 = vector.multi_reduction <add>, %0, %cst_2 [1] : vector<1x4x256xf32> to vector<1x256xf32>
    %3 = tpu.iota {dimensions = array<i32: 1>} : vector<1x256xi32>
    %c15_i32 = arith.constant 15 : i32
    %4 = vector.broadcast %c15_i32 : i32 to vector<1x256xi32>
    %5 = arith.andi %3, %4 : vector<1x256xi32>
    %c48_i32 = arith.constant 48 : i32
    %6 = vector.broadcast %c48_i32 : i32 to vector<1x256xi32>
    %7 = arith.cmpi sge, %3, %6 : vector<1x256xi32>
    %c3_i32 = arith.constant 3 : i32
    %8 = vector.broadcast %c3_i32 : i32 to vector<1x256xi32>
    %9 = arith.cmpi sge, %5, %8 : vector<1x256xi32>
    %c32_i32 = arith.constant 32 : i32
    %10 = vector.broadcast %c32_i32 : i32 to vector<1x256xi32>
    %11 = arith.cmpi sge, %3, %10 : vector<1x256xi32>
    %c2_i32 = arith.constant 2 : i32
    %12 = vector.broadcast %c2_i32 : i32 to vector<1x256xi32>
    %13 = arith.cmpi sge, %5, %12 : vector<1x256xi32>
    %c16_i32 = arith.constant 16 : i32
    %14 = vector.broadcast %c16_i32 : i32 to vector<1x256xi32>
    %15 = arith.cmpi sge, %3, %14 : vector<1x256xi32>
    %c1_i32 = arith.constant 1 : i32
    %16 = vector.broadcast %c1_i32 : i32 to vector<1x256xi32>
    %17 = arith.cmpi sge, %5, %16 : vector<1x256xi32>
    %c240_i32 = arith.constant 240 : i32
    %18 = vector.broadcast %c240_i32 : i32 to vector<1x256xi32>
    %19 = arith.cmpi slt, %3, %18 : vector<1x256xi32>
    %c15_i32_3 = arith.constant 15 : i32
    %20 = vector.broadcast %c15_i32_3 : i32 to vector<1x256xi32>
    %21 = arith.cmpi slt, %5, %20 : vector<1x256xi32>
    %c224_i32 = arith.constant 224 : i32
    %22 = vector.broadcast %c224_i32 : i32 to vector<1x256xi32>
    %23 = arith.cmpi slt, %3, %22 : vector<1x256xi32>
    %c14_i32 = arith.constant 14 : i32
    %24 = vector.broadcast %c14_i32 : i32 to vector<1x256xi32>
    %25 = arith.cmpi slt, %5, %24 : vector<1x256xi32>
    %c208_i32 = arith.constant 208 : i32
    %26 = vector.broadcast %c208_i32 : i32 to vector<1x256xi32>
    %27 = arith.cmpi slt, %3, %26 : vector<1x256xi32>
    %c13_i32 = arith.constant 13 : i32
    %28 = vector.broadcast %c13_i32 : i32 to vector<1x256xi32>
    %29 = arith.cmpi slt, %5, %28 : vector<1x256xi32>
    %c0_4 = arith.constant 0 : index
    %30 = memref.load %arg3[%c0_4] : memref<1xf32, #tpu.memory_space<smem>>
    %31 = vector.broadcast %30 : f32 to vector<1x256xf32>
    %c48_i32_5 = arith.constant 48 : i32
    %32 = tpu.dynamic_rotate %1 by %c48_i32_5 dim 1 : vector<1x256xf32>, i32 -> vector<1x256xf32>
    %cst_6 = arith.constant 0.000000e+00 : f32
    %33 = vector.broadcast %cst_6 : f32 to vector<1x256xf32>
    %34 = arith.select %7, %32, %33 : vector<1x256xi1>, vector<1x256xf32>
    %c3_i32_7 = arith.constant 3 : i32
    %35 = tpu.dynamic_rotate %34 by %c3_i32_7 dim 1 : vector<1x256xf32>, i32 -> vector<1x256xf32>
    %cst_8 = arith.constant 0.000000e+00 : f32
    %36 = vector.broadcast %cst_8 : f32 to vector<1x256xf32>
    %37 = arith.select %9, %35, %36 : vector<1x256xi1>, vector<1x256xf32>
    %c0_9 = arith.constant 0 : index
    %38 = memref.load %arg2[%c0_9] : memref<98xf32, #tpu.memory_space<smem>>
    %39 = vector.broadcast %38 : f32 to vector<1x256xf32>
    %40 = arith.mulf %39, %37 : vector<1x256xf32>
    %41 = arith.addf %31, %40 : vector<1x256xf32>
    %c2_i32_10 = arith.constant 2 : i32
    %42 = tpu.dynamic_rotate %34 by %c2_i32_10 dim 1 : vector<1x256xf32>, i32 -> vector<1x256xf32>
    %cst_11 = arith.constant 0.000000e+00 : f32
    %43 = vector.broadcast %cst_11 : f32 to vector<1x256xf32>
    %44 = arith.select %13, %42, %43 : vector<1x256xi1>, vector<1x256xf32>
    %c1 = arith.constant 1 : index
    %45 = memref.load %arg2[%c1] : memref<98xf32, #tpu.memory_space<smem>>
    %46 = vector.broadcast %45 : f32 to vector<1x256xf32>
    %47 = arith.mulf %46, %44 : vector<1x256xf32>
    %48 = arith.addf %41, %47 : vector<1x256xf32>
    %c1_i32_12 = arith.constant 1 : i32
    %49 = tpu.dynamic_rotate %34 by %c1_i32_12 dim 1 : vector<1x256xf32>, i32 -> vector<1x256xf32>
    %cst_13 = arith.constant 0.000000e+00 : f32
    %50 = vector.broadcast %cst_13 : f32 to vector<1x256xf32>
    %51 = arith.select %17, %49, %50 : vector<1x256xi1>, vector<1x256xf32>
    %c2 = arith.constant 2 : index
    %52 = memref.load %arg2[%c2] : memref<98xf32, #tpu.memory_space<smem>>
    %53 = vector.broadcast %52 : f32 to vector<1x256xf32>
    %54 = arith.mulf %53, %51 : vector<1x256xf32>
    %55 = arith.addf %48, %54 : vector<1x256xf32>
    %c3 = arith.constant 3 : index
    %56 = memref.load %arg2[%c3] : memref<98xf32, #tpu.memory_space<smem>>
    %57 = vector.broadcast %56 : f32 to vector<1x256xf32>
    %58 = arith.mulf %57, %34 : vector<1x256xf32>
    %59 = arith.addf %55, %58 : vector<1x256xf32>
    %c255_i32 = arith.constant 255 : i32
    %60 = tpu.dynamic_rotate %34 by %c255_i32 dim 1 : vector<1x256xf32>, i32 -> vector<1x256xf32>
    %cst_14 = arith.constant 0.000000e+00 : f32
    %61 = vector.broadcast %cst_14 : f32 to vector<1x256xf32>
    %62 = arith.select %21, %60, %61 : vector<1x256xi1>, vector<1x256xf32>
    %c4 = arith.constant 4 : index
    %63 = memref.load %arg2[%c4] : memref<98xf32, #tpu.memory_space<smem>>
    %64 = vector.broadcast %63 : f32 to vector<1x256xf32>
    %65 = arith.mulf %64, %62 : vector<1x256xf32>
    %66 = arith.addf %59, %65 : vector<1x256xf32>
    %c254_i32 = arith.constant 254 : i32
    %67 = tpu.dynamic_rotate %34 by %c254_i32 dim 1 : vector<1x256xf32>, i32 -> vector<1x256xf32>
    %cst_15 = arith.constant 0.000000e+00 : f32
    %68 = vector.broadcast %cst_15 : f32 to vector<1x256xf32>
    %69 = arith.select %25, %67, %68 : vector<1x256xi1>, vector<1x256xf32>
    %c5 = arith.constant 5 : index
    %70 = memref.load %arg2[%c5] : memref<98xf32, #tpu.memory_space<smem>>
    %71 = vector.broadcast %70 : f32 to vector<1x256xf32>
    %72 = arith.mulf %71, %69 : vector<1x256xf32>
    %73 = arith.addf %66, %72 : vector<1x256xf32>
    %c253_i32 = arith.constant 253 : i32
    %74 = tpu.dynamic_rotate %34 by %c253_i32 dim 1 : vector<1x256xf32>, i32 -> vector<1x256xf32>
    %cst_16 = arith.constant 0.000000e+00 : f32
    %75 = vector.broadcast %cst_16 : f32 to vector<1x256xf32>
    %76 = arith.select %29, %74, %75 : vector<1x256xi1>, vector<1x256xf32>
    %c6 = arith.constant 6 : index
    %77 = memref.load %arg2[%c6] : memref<98xf32, #tpu.memory_space<smem>>
    %78 = vector.broadcast %77 : f32 to vector<1x256xf32>
    %79 = arith.mulf %78, %76 : vector<1x256xf32>
    %80 = arith.addf %73, %79 : vector<1x256xf32>
    %c32_i32_17 = arith.constant 32 : i32
    %81 = tpu.dynamic_rotate %1 by %c32_i32_17 dim 1 : vector<1x256xf32>, i32 -> vector<1x256xf32>
    %cst_18 = arith.constant 0.000000e+00 : f32
    %82 = vector.broadcast %cst_18 : f32 to vector<1x256xf32>
    %83 = arith.select %11, %81, %82 : vector<1x256xi1>, vector<1x256xf32>
    %c3_i32_19 = arith.constant 3 : i32
    %84 = tpu.dynamic_rotate %83 by %c3_i32_19 dim 1 : vector<1x256xf32>, i32 -> vector<1x256xf32>
    %cst_20 = arith.constant 0.000000e+00 : f32
    %85 = vector.broadcast %cst_20 : f32 to vector<1x256xf32>
    %86 = arith.select %9, %84, %85 : vector<1x256xi1>, vector<1x256xf32>
    %c7 = arith.constant 7 : index
    %87 = memref.load %arg2[%c7] : memref<98xf32, #tpu.memory_space<smem>>
    %88 = vector.broadcast %87 : f32 to vector<1x256xf32>
    %89 = arith.mulf %88, %86 : vector<1x256xf32>
    %90 = arith.addf %80, %89 : vector<1x256xf32>
    %c2_i32_21 = arith.constant 2 : i32
    %91 = tpu.dynamic_rotate %83 by %c2_i32_21 dim 1 : vector<1x256xf32>, i32 -> vector<1x256xf32>
    %cst_22 = arith.constant 0.000000e+00 : f32
    %92 = vector.broadcast %cst_22 : f32 to vector<1x256xf32>
    %93 = arith.select %13, %91, %92 : vector<1x256xi1>, vector<1x256xf32>
    %c8 = arith.constant 8 : index
    %94 = memref.load %arg2[%c8] : memref<98xf32, #tpu.memory_space<smem>>
    %95 = vector.broadcast %94 : f32 to vector<1x256xf32>
    %96 = arith.mulf %95, %93 : vector<1x256xf32>
    %97 = arith.addf %90, %96 : vector<1x256xf32>
    %c1_i32_23 = arith.constant 1 : i32
    %98 = tpu.dynamic_rotate %83 by %c1_i32_23 dim 1 : vector<1x256xf32>, i32 -> vector<1x256xf32>
    %cst_24 = arith.constant 0.000000e+00 : f32
    %99 = vector.broadcast %cst_24 : f32 to vector<1x256xf32>
    %100 = arith.select %17, %98, %99 : vector<1x256xi1>, vector<1x256xf32>
    %c9 = arith.constant 9 : index
    %101 = memref.load %arg2[%c9] : memref<98xf32, #tpu.memory_space<smem>>
    %102 = vector.broadcast %101 : f32 to vector<1x256xf32>
    %103 = arith.mulf %102, %100 : vector<1x256xf32>
    %104 = arith.addf %97, %103 : vector<1x256xf32>
    %c10 = arith.constant 10 : index
    %105 = memref.load %arg2[%c10] : memref<98xf32, #tpu.memory_space<smem>>
    %106 = vector.broadcast %105 : f32 to vector<1x256xf32>
    %107 = arith.mulf %106, %83 : vector<1x256xf32>
    %108 = arith.addf %104, %107 : vector<1x256xf32>
    %c255_i32_25 = arith.constant 255 : i32
    %109 = tpu.dynamic_rotate %83 by %c255_i32_25 dim 1 : vector<1x256xf32>, i32 -> vector<1x256xf32>
    %cst_26 = arith.constant 0.000000e+00 : f32
    %110 = vector.broadcast %cst_26 : f32 to vector<1x256xf32>
    %111 = arith.select %21, %109, %110 : vector<1x256xi1>, vector<1x256xf32>
    %c11 = arith.constant 11 : index
    %112 = memref.load %arg2[%c11] : memref<98xf32, #tpu.memory_space<smem>>
    %113 = vector.broadcast %112 : f32 to vector<1x256xf32>
    %114 = arith.mulf %113, %111 : vector<1x256xf32>
    %115 = arith.addf %108, %114 : vector<1x256xf32>
    %c254_i32_27 = arith.constant 254 : i32
    %116 = tpu.dynamic_rotate %83 by %c254_i32_27 dim 1 : vector<1x256xf32>, i32 -> vector<1x256xf32>
    %cst_28 = arith.constant 0.000000e+00 : f32
    %117 = vector.broadcast %cst_28 : f32 to vector<1x256xf32>
    %118 = arith.select %25, %116, %117 : vector<1x256xi1>, vector<1x256xf32>
    %c12 = arith.constant 12 : index
    %119 = memref.load %arg2[%c12] : memref<98xf32, #tpu.memory_space<smem>>
    %120 = vector.broadcast %119 : f32 to vector<1x256xf32>
    %121 = arith.mulf %120, %118 : vector<1x256xf32>
    %122 = arith.addf %115, %121 : vector<1x256xf32>
    %c253_i32_29 = arith.constant 253 : i32
    %123 = tpu.dynamic_rotate %83 by %c253_i32_29 dim 1 : vector<1x256xf32>, i32 -> vector<1x256xf32>
    %cst_30 = arith.constant 0.000000e+00 : f32
    %124 = vector.broadcast %cst_30 : f32 to vector<1x256xf32>
    %125 = arith.select %29, %123, %124 : vector<1x256xi1>, vector<1x256xf32>
    %c13 = arith.constant 13 : index
    %126 = memref.load %arg2[%c13] : memref<98xf32, #tpu.memory_space<smem>>
    %127 = vector.broadcast %126 : f32 to vector<1x256xf32>
    %128 = arith.mulf %127, %125 : vector<1x256xf32>
    %129 = arith.addf %122, %128 : vector<1x256xf32>
    %c16_i32_31 = arith.constant 16 : i32
    %130 = tpu.dynamic_rotate %1 by %c16_i32_31 dim 1 : vector<1x256xf32>, i32 -> vector<1x256xf32>
    %cst_32 = arith.constant 0.000000e+00 : f32
    %131 = vector.broadcast %cst_32 : f32 to vector<1x256xf32>
    %132 = arith.select %15, %130, %131 : vector<1x256xi1>, vector<1x256xf32>
    %c3_i32_33 = arith.constant 3 : i32
    %133 = tpu.dynamic_rotate %132 by %c3_i32_33 dim 1 : vector<1x256xf32>, i32 -> vector<1x256xf32>
    %cst_34 = arith.constant 0.000000e+00 : f32
    %134 = vector.broadcast %cst_34 : f32 to vector<1x256xf32>
    %135 = arith.select %9, %133, %134 : vector<1x256xi1>, vector<1x256xf32>
    %c14 = arith.constant 14 : index
    %136 = memref.load %arg2[%c14] : memref<98xf32, #tpu.memory_space<smem>>
    %137 = vector.broadcast %136 : f32 to vector<1x256xf32>
    %138 = arith.mulf %137, %135 : vector<1x256xf32>
    %139 = arith.addf %129, %138 : vector<1x256xf32>
    %c2_i32_35 = arith.constant 2 : i32
    %140 = tpu.dynamic_rotate %132 by %c2_i32_35 dim 1 : vector<1x256xf32>, i32 -> vector<1x256xf32>
    %cst_36 = arith.constant 0.000000e+00 : f32
    %141 = vector.broadcast %cst_36 : f32 to vector<1x256xf32>
    %142 = arith.select %13, %140, %141 : vector<1x256xi1>, vector<1x256xf32>
    %c15 = arith.constant 15 : index
    %143 = memref.load %arg2[%c15] : memref<98xf32, #tpu.memory_space<smem>>
    %144 = vector.broadcast %143 : f32 to vector<1x256xf32>
    %145 = arith.mulf %144, %142 : vector<1x256xf32>
    %146 = arith.addf %139, %145 : vector<1x256xf32>
    %c1_i32_37 = arith.constant 1 : i32
    %147 = tpu.dynamic_rotate %132 by %c1_i32_37 dim 1 : vector<1x256xf32>, i32 -> vector<1x256xf32>
    %cst_38 = arith.constant 0.000000e+00 : f32
    %148 = vector.broadcast %cst_38 : f32 to vector<1x256xf32>
    %149 = arith.select %17, %147, %148 : vector<1x256xi1>, vector<1x256xf32>
    %c16 = arith.constant 16 : index
    %150 = memref.load %arg2[%c16] : memref<98xf32, #tpu.memory_space<smem>>
    %151 = vector.broadcast %150 : f32 to vector<1x256xf32>
    %152 = arith.mulf %151, %149 : vector<1x256xf32>
    %153 = arith.addf %146, %152 : vector<1x256xf32>
    %c17 = arith.constant 17 : index
    %154 = memref.load %arg2[%c17] : memref<98xf32, #tpu.memory_space<smem>>
    %155 = vector.broadcast %154 : f32 to vector<1x256xf32>
    %156 = arith.mulf %155, %132 : vector<1x256xf32>
    %157 = arith.addf %153, %156 : vector<1x256xf32>
    %c255_i32_39 = arith.constant 255 : i32
    %158 = tpu.dynamic_rotate %132 by %c255_i32_39 dim 1 : vector<1x256xf32>, i32 -> vector<1x256xf32>
    %cst_40 = arith.constant 0.000000e+00 : f32
    %159 = vector.broadcast %cst_40 : f32 to vector<1x256xf32>
    %160 = arith.select %21, %158, %159 : vector<1x256xi1>, vector<1x256xf32>
    %c18 = arith.constant 18 : index
    %161 = memref.load %arg2[%c18] : memref<98xf32, #tpu.memory_space<smem>>
    %162 = vector.broadcast %161 : f32 to vector<1x256xf32>
    %163 = arith.mulf %162, %160 : vector<1x256xf32>
    %164 = arith.addf %157, %163 : vector<1x256xf32>
    %c254_i32_41 = arith.constant 254 : i32
    %165 = tpu.dynamic_rotate %132 by %c254_i32_41 dim 1 : vector<1x256xf32>, i32 -> vector<1x256xf32>
    %cst_42 = arith.constant 0.000000e+00 : f32
    %166 = vector.broadcast %cst_42 : f32 to vector<1x256xf32>
    %167 = arith.select %25, %165, %166 : vector<1x256xi1>, vector<1x256xf32>
    %c19 = arith.constant 19 : index
    %168 = memref.load %arg2[%c19] : memref<98xf32, #tpu.memory_space<smem>>
    %169 = vector.broadcast %168 : f32 to vector<1x256xf32>
    %170 = arith.mulf %169, %167 : vector<1x256xf32>
    %171 = arith.addf %164, %170 : vector<1x256xf32>
    %c253_i32_43 = arith.constant 253 : i32
    %172 = tpu.dynamic_rotate %132 by %c253_i32_43 dim 1 : vector<1x256xf32>, i32 -> vector<1x256xf32>
    %cst_44 = arith.constant 0.000000e+00 : f32
    %173 = vector.broadcast %cst_44 : f32 to vector<1x256xf32>
    %174 = arith.select %29, %172, %173 : vector<1x256xi1>, vector<1x256xf32>
    %c20 = arith.constant 20 : index
    %175 = memref.load %arg2[%c20] : memref<98xf32, #tpu.memory_space<smem>>
    %176 = vector.broadcast %175 : f32 to vector<1x256xf32>
    %177 = arith.mulf %176, %174 : vector<1x256xf32>
    %178 = arith.addf %171, %177 : vector<1x256xf32>
    %c3_i32_45 = arith.constant 3 : i32
    %179 = tpu.dynamic_rotate %1 by %c3_i32_45 dim 1 : vector<1x256xf32>, i32 -> vector<1x256xf32>
    %cst_46 = arith.constant 0.000000e+00 : f32
    %180 = vector.broadcast %cst_46 : f32 to vector<1x256xf32>
    %181 = arith.select %9, %179, %180 : vector<1x256xi1>, vector<1x256xf32>
    %c21 = arith.constant 21 : index
    %182 = memref.load %arg2[%c21] : memref<98xf32, #tpu.memory_space<smem>>
    %183 = vector.broadcast %182 : f32 to vector<1x256xf32>
    %184 = arith.mulf %183, %181 : vector<1x256xf32>
    %185 = arith.addf %178, %184 : vector<1x256xf32>
    %c2_i32_47 = arith.constant 2 : i32
    %186 = tpu.dynamic_rotate %1 by %c2_i32_47 dim 1 : vector<1x256xf32>, i32 -> vector<1x256xf32>
    %cst_48 = arith.constant 0.000000e+00 : f32
    %187 = vector.broadcast %cst_48 : f32 to vector<1x256xf32>
    %188 = arith.select %13, %186, %187 : vector<1x256xi1>, vector<1x256xf32>
    %c22 = arith.constant 22 : index
    %189 = memref.load %arg2[%c22] : memref<98xf32, #tpu.memory_space<smem>>
    %190 = vector.broadcast %189 : f32 to vector<1x256xf32>
    %191 = arith.mulf %190, %188 : vector<1x256xf32>
    %192 = arith.addf %185, %191 : vector<1x256xf32>
    %c1_i32_49 = arith.constant 1 : i32
    %193 = tpu.dynamic_rotate %1 by %c1_i32_49 dim 1 : vector<1x256xf32>, i32 -> vector<1x256xf32>
    %cst_50 = arith.constant 0.000000e+00 : f32
    %194 = vector.broadcast %cst_50 : f32 to vector<1x256xf32>
    %195 = arith.select %17, %193, %194 : vector<1x256xi1>, vector<1x256xf32>
    %c23 = arith.constant 23 : index
    %196 = memref.load %arg2[%c23] : memref<98xf32, #tpu.memory_space<smem>>
    %197 = vector.broadcast %196 : f32 to vector<1x256xf32>
    %198 = arith.mulf %197, %195 : vector<1x256xf32>
    %199 = arith.addf %192, %198 : vector<1x256xf32>
    %c24 = arith.constant 24 : index
    %200 = memref.load %arg2[%c24] : memref<98xf32, #tpu.memory_space<smem>>
    %201 = vector.broadcast %200 : f32 to vector<1x256xf32>
    %202 = arith.mulf %201, %1 : vector<1x256xf32>
    %203 = arith.addf %199, %202 : vector<1x256xf32>
    %c255_i32_51 = arith.constant 255 : i32
    %204 = tpu.dynamic_rotate %1 by %c255_i32_51 dim 1 : vector<1x256xf32>, i32 -> vector<1x256xf32>
    %cst_52 = arith.constant 0.000000e+00 : f32
    %205 = vector.broadcast %cst_52 : f32 to vector<1x256xf32>
    %206 = arith.select %21, %204, %205 : vector<1x256xi1>, vector<1x256xf32>
    %c25 = arith.constant 25 : index
    %207 = memref.load %arg2[%c25] : memref<98xf32, #tpu.memory_space<smem>>
    %208 = vector.broadcast %207 : f32 to vector<1x256xf32>
    %209 = arith.mulf %208, %206 : vector<1x256xf32>
    %210 = arith.addf %203, %209 : vector<1x256xf32>
    %c254_i32_53 = arith.constant 254 : i32
    %211 = tpu.dynamic_rotate %1 by %c254_i32_53 dim 1 : vector<1x256xf32>, i32 -> vector<1x256xf32>
    %cst_54 = arith.constant 0.000000e+00 : f32
    %212 = vector.broadcast %cst_54 : f32 to vector<1x256xf32>
    %213 = arith.select %25, %211, %212 : vector<1x256xi1>, vector<1x256xf32>
    %c26 = arith.constant 26 : index
    %214 = memref.load %arg2[%c26] : memref<98xf32, #tpu.memory_space<smem>>
    %215 = vector.broadcast %214 : f32 to vector<1x256xf32>
    %216 = arith.mulf %215, %213 : vector<1x256xf32>
    %217 = arith.addf %210, %216 : vector<1x256xf32>
    %c253_i32_55 = arith.constant 253 : i32
    %218 = tpu.dynamic_rotate %1 by %c253_i32_55 dim 1 : vector<1x256xf32>, i32 -> vector<1x256xf32>
    %cst_56 = arith.constant 0.000000e+00 : f32
    %219 = vector.broadcast %cst_56 : f32 to vector<1x256xf32>
    %220 = arith.select %29, %218, %219 : vector<1x256xi1>, vector<1x256xf32>
    %c27 = arith.constant 27 : index
    %221 = memref.load %arg2[%c27] : memref<98xf32, #tpu.memory_space<smem>>
    %222 = vector.broadcast %221 : f32 to vector<1x256xf32>
    %223 = arith.mulf %222, %220 : vector<1x256xf32>
    %224 = arith.addf %217, %223 : vector<1x256xf32>
    %c240_i32_57 = arith.constant 240 : i32
    %225 = tpu.dynamic_rotate %1 by %c240_i32_57 dim 1 : vector<1x256xf32>, i32 -> vector<1x256xf32>
    %cst_58 = arith.constant 0.000000e+00 : f32
    %226 = vector.broadcast %cst_58 : f32 to vector<1x256xf32>
    %227 = arith.select %19, %225, %226 : vector<1x256xi1>, vector<1x256xf32>
    %c3_i32_59 = arith.constant 3 : i32
    %228 = tpu.dynamic_rotate %227 by %c3_i32_59 dim 1 : vector<1x256xf32>, i32 -> vector<1x256xf32>
    %cst_60 = arith.constant 0.000000e+00 : f32
    %229 = vector.broadcast %cst_60 : f32 to vector<1x256xf32>
    %230 = arith.select %9, %228, %229 : vector<1x256xi1>, vector<1x256xf32>
    %c28 = arith.constant 28 : index
    %231 = memref.load %arg2[%c28] : memref<98xf32, #tpu.memory_space<smem>>
    %232 = vector.broadcast %231 : f32 to vector<1x256xf32>
    %233 = arith.mulf %232, %230 : vector<1x256xf32>
    %234 = arith.addf %224, %233 : vector<1x256xf32>
    %c2_i32_61 = arith.constant 2 : i32
    %235 = tpu.dynamic_rotate %227 by %c2_i32_61 dim 1 : vector<1x256xf32>, i32 -> vector<1x256xf32>
    %cst_62 = arith.constant 0.000000e+00 : f32
    %236 = vector.broadcast %cst_62 : f32 to vector<1x256xf32>
    %237 = arith.select %13, %235, %236 : vector<1x256xi1>, vector<1x256xf32>
    %c29 = arith.constant 29 : index
    %238 = memref.load %arg2[%c29] : memref<98xf32, #tpu.memory_space<smem>>
    %239 = vector.broadcast %238 : f32 to vector<1x256xf32>
    %240 = arith.mulf %239, %237 : vector<1x256xf32>
    %241 = arith.addf %234, %240 : vector<1x256xf32>
    %c1_i32_63 = arith.constant 1 : i32
    %242 = tpu.dynamic_rotate %227 by %c1_i32_63 dim 1 : vector<1x256xf32>, i32 -> vector<1x256xf32>
    %cst_64 = arith.constant 0.000000e+00 : f32
    %243 = vector.broadcast %cst_64 : f32 to vector<1x256xf32>
    %244 = arith.select %17, %242, %243 : vector<1x256xi1>, vector<1x256xf32>
    %c30 = arith.constant 30 : index
    %245 = memref.load %arg2[%c30] : memref<98xf32, #tpu.memory_space<smem>>
    %246 = vector.broadcast %245 : f32 to vector<1x256xf32>
    %247 = arith.mulf %246, %244 : vector<1x256xf32>
    %248 = arith.addf %241, %247 : vector<1x256xf32>
    %c31 = arith.constant 31 : index
    %249 = memref.load %arg2[%c31] : memref<98xf32, #tpu.memory_space<smem>>
    %250 = vector.broadcast %249 : f32 to vector<1x256xf32>
    %251 = arith.mulf %250, %227 : vector<1x256xf32>
    %252 = arith.addf %248, %251 : vector<1x256xf32>
    %c255_i32_65 = arith.constant 255 : i32
    %253 = tpu.dynamic_rotate %227 by %c255_i32_65 dim 1 : vector<1x256xf32>, i32 -> vector<1x256xf32>
    %cst_66 = arith.constant 0.000000e+00 : f32
    %254 = vector.broadcast %cst_66 : f32 to vector<1x256xf32>
    %255 = arith.select %21, %253, %254 : vector<1x256xi1>, vector<1x256xf32>
    %c32 = arith.constant 32 : index
    %256 = memref.load %arg2[%c32] : memref<98xf32, #tpu.memory_space<smem>>
    %257 = vector.broadcast %256 : f32 to vector<1x256xf32>
    %258 = arith.mulf %257, %255 : vector<1x256xf32>
    %259 = arith.addf %252, %258 : vector<1x256xf32>
    %c254_i32_67 = arith.constant 254 : i32
    %260 = tpu.dynamic_rotate %227 by %c254_i32_67 dim 1 : vector<1x256xf32>, i32 -> vector<1x256xf32>
    %cst_68 = arith.constant 0.000000e+00 : f32
    %261 = vector.broadcast %cst_68 : f32 to vector<1x256xf32>
    %262 = arith.select %25, %260, %261 : vector<1x256xi1>, vector<1x256xf32>
    %c33 = arith.constant 33 : index
    %263 = memref.load %arg2[%c33] : memref<98xf32, #tpu.memory_space<smem>>
    %264 = vector.broadcast %263 : f32 to vector<1x256xf32>
    %265 = arith.mulf %264, %262 : vector<1x256xf32>
    %266 = arith.addf %259, %265 : vector<1x256xf32>
    %c253_i32_69 = arith.constant 253 : i32
    %267 = tpu.dynamic_rotate %227 by %c253_i32_69 dim 1 : vector<1x256xf32>, i32 -> vector<1x256xf32>
    %cst_70 = arith.constant 0.000000e+00 : f32
    %268 = vector.broadcast %cst_70 : f32 to vector<1x256xf32>
    %269 = arith.select %29, %267, %268 : vector<1x256xi1>, vector<1x256xf32>
    %c34 = arith.constant 34 : index
    %270 = memref.load %arg2[%c34] : memref<98xf32, #tpu.memory_space<smem>>
    %271 = vector.broadcast %270 : f32 to vector<1x256xf32>
    %272 = arith.mulf %271, %269 : vector<1x256xf32>
    %273 = arith.addf %266, %272 : vector<1x256xf32>
    %c224_i32_71 = arith.constant 224 : i32
    %274 = tpu.dynamic_rotate %1 by %c224_i32_71 dim 1 : vector<1x256xf32>, i32 -> vector<1x256xf32>
    %cst_72 = arith.constant 0.000000e+00 : f32
    %275 = vector.broadcast %cst_72 : f32 to vector<1x256xf32>
    %276 = arith.select %23, %274, %275 : vector<1x256xi1>, vector<1x256xf32>
    %c3_i32_73 = arith.constant 3 : i32
    %277 = tpu.dynamic_rotate %276 by %c3_i32_73 dim 1 : vector<1x256xf32>, i32 -> vector<1x256xf32>
    %cst_74 = arith.constant 0.000000e+00 : f32
    %278 = vector.broadcast %cst_74 : f32 to vector<1x256xf32>
    %279 = arith.select %9, %277, %278 : vector<1x256xi1>, vector<1x256xf32>
    %c35 = arith.constant 35 : index
    %280 = memref.load %arg2[%c35] : memref<98xf32, #tpu.memory_space<smem>>
    %281 = vector.broadcast %280 : f32 to vector<1x256xf32>
    %282 = arith.mulf %281, %279 : vector<1x256xf32>
    %283 = arith.addf %273, %282 : vector<1x256xf32>
    %c2_i32_75 = arith.constant 2 : i32
    %284 = tpu.dynamic_rotate %276 by %c2_i32_75 dim 1 : vector<1x256xf32>, i32 -> vector<1x256xf32>
    %cst_76 = arith.constant 0.000000e+00 : f32
    %285 = vector.broadcast %cst_76 : f32 to vector<1x256xf32>
    %286 = arith.select %13, %284, %285 : vector<1x256xi1>, vector<1x256xf32>
    %c36 = arith.constant 36 : index
    %287 = memref.load %arg2[%c36] : memref<98xf32, #tpu.memory_space<smem>>
    %288 = vector.broadcast %287 : f32 to vector<1x256xf32>
    %289 = arith.mulf %288, %286 : vector<1x256xf32>
    %290 = arith.addf %283, %289 : vector<1x256xf32>
    %c1_i32_77 = arith.constant 1 : i32
    %291 = tpu.dynamic_rotate %276 by %c1_i32_77 dim 1 : vector<1x256xf32>, i32 -> vector<1x256xf32>
    %cst_78 = arith.constant 0.000000e+00 : f32
    %292 = vector.broadcast %cst_78 : f32 to vector<1x256xf32>
    %293 = arith.select %17, %291, %292 : vector<1x256xi1>, vector<1x256xf32>
    %c37 = arith.constant 37 : index
    %294 = memref.load %arg2[%c37] : memref<98xf32, #tpu.memory_space<smem>>
    %295 = vector.broadcast %294 : f32 to vector<1x256xf32>
    %296 = arith.mulf %295, %293 : vector<1x256xf32>
    %297 = arith.addf %290, %296 : vector<1x256xf32>
    %c38 = arith.constant 38 : index
    %298 = memref.load %arg2[%c38] : memref<98xf32, #tpu.memory_space<smem>>
    %299 = vector.broadcast %298 : f32 to vector<1x256xf32>
    %300 = arith.mulf %299, %276 : vector<1x256xf32>
    %301 = arith.addf %297, %300 : vector<1x256xf32>
    %c255_i32_79 = arith.constant 255 : i32
    %302 = tpu.dynamic_rotate %276 by %c255_i32_79 dim 1 : vector<1x256xf32>, i32 -> vector<1x256xf32>
    %cst_80 = arith.constant 0.000000e+00 : f32
    %303 = vector.broadcast %cst_80 : f32 to vector<1x256xf32>
    %304 = arith.select %21, %302, %303 : vector<1x256xi1>, vector<1x256xf32>
    %c39 = arith.constant 39 : index
    %305 = memref.load %arg2[%c39] : memref<98xf32, #tpu.memory_space<smem>>
    %306 = vector.broadcast %305 : f32 to vector<1x256xf32>
    %307 = arith.mulf %306, %304 : vector<1x256xf32>
    %308 = arith.addf %301, %307 : vector<1x256xf32>
    %c254_i32_81 = arith.constant 254 : i32
    %309 = tpu.dynamic_rotate %276 by %c254_i32_81 dim 1 : vector<1x256xf32>, i32 -> vector<1x256xf32>
    %cst_82 = arith.constant 0.000000e+00 : f32
    %310 = vector.broadcast %cst_82 : f32 to vector<1x256xf32>
    %311 = arith.select %25, %309, %310 : vector<1x256xi1>, vector<1x256xf32>
    %c40 = arith.constant 40 : index
    %312 = memref.load %arg2[%c40] : memref<98xf32, #tpu.memory_space<smem>>
    %313 = vector.broadcast %312 : f32 to vector<1x256xf32>
    %314 = arith.mulf %313, %311 : vector<1x256xf32>
    %315 = arith.addf %308, %314 : vector<1x256xf32>
    %c253_i32_83 = arith.constant 253 : i32
    %316 = tpu.dynamic_rotate %276 by %c253_i32_83 dim 1 : vector<1x256xf32>, i32 -> vector<1x256xf32>
    %cst_84 = arith.constant 0.000000e+00 : f32
    %317 = vector.broadcast %cst_84 : f32 to vector<1x256xf32>
    %318 = arith.select %29, %316, %317 : vector<1x256xi1>, vector<1x256xf32>
    %c41 = arith.constant 41 : index
    %319 = memref.load %arg2[%c41] : memref<98xf32, #tpu.memory_space<smem>>
    %320 = vector.broadcast %319 : f32 to vector<1x256xf32>
    %321 = arith.mulf %320, %318 : vector<1x256xf32>
    %322 = arith.addf %315, %321 : vector<1x256xf32>
    %c208_i32_85 = arith.constant 208 : i32
    %323 = tpu.dynamic_rotate %1 by %c208_i32_85 dim 1 : vector<1x256xf32>, i32 -> vector<1x256xf32>
    %cst_86 = arith.constant 0.000000e+00 : f32
    %324 = vector.broadcast %cst_86 : f32 to vector<1x256xf32>
    %325 = arith.select %27, %323, %324 : vector<1x256xi1>, vector<1x256xf32>
    %c3_i32_87 = arith.constant 3 : i32
    %326 = tpu.dynamic_rotate %325 by %c3_i32_87 dim 1 : vector<1x256xf32>, i32 -> vector<1x256xf32>
    %cst_88 = arith.constant 0.000000e+00 : f32
    %327 = vector.broadcast %cst_88 : f32 to vector<1x256xf32>
    %328 = arith.select %9, %326, %327 : vector<1x256xi1>, vector<1x256xf32>
    %c42 = arith.constant 42 : index
    %329 = memref.load %arg2[%c42] : memref<98xf32, #tpu.memory_space<smem>>
    %330 = vector.broadcast %329 : f32 to vector<1x256xf32>
    %331 = arith.mulf %330, %328 : vector<1x256xf32>
    %332 = arith.addf %322, %331 : vector<1x256xf32>
    %c2_i32_89 = arith.constant 2 : i32
    %333 = tpu.dynamic_rotate %325 by %c2_i32_89 dim 1 : vector<1x256xf32>, i32 -> vector<1x256xf32>
    %cst_90 = arith.constant 0.000000e+00 : f32
    %334 = vector.broadcast %cst_90 : f32 to vector<1x256xf32>
    %335 = arith.select %13, %333, %334 : vector<1x256xi1>, vector<1x256xf32>
    %c43 = arith.constant 43 : index
    %336 = memref.load %arg2[%c43] : memref<98xf32, #tpu.memory_space<smem>>
    %337 = vector.broadcast %336 : f32 to vector<1x256xf32>
    %338 = arith.mulf %337, %335 : vector<1x256xf32>
    %339 = arith.addf %332, %338 : vector<1x256xf32>
    %c1_i32_91 = arith.constant 1 : i32
    %340 = tpu.dynamic_rotate %325 by %c1_i32_91 dim 1 : vector<1x256xf32>, i32 -> vector<1x256xf32>
    %cst_92 = arith.constant 0.000000e+00 : f32
    %341 = vector.broadcast %cst_92 : f32 to vector<1x256xf32>
    %342 = arith.select %17, %340, %341 : vector<1x256xi1>, vector<1x256xf32>
    %c44 = arith.constant 44 : index
    %343 = memref.load %arg2[%c44] : memref<98xf32, #tpu.memory_space<smem>>
    %344 = vector.broadcast %343 : f32 to vector<1x256xf32>
    %345 = arith.mulf %344, %342 : vector<1x256xf32>
    %346 = arith.addf %339, %345 : vector<1x256xf32>
    %c45 = arith.constant 45 : index
    %347 = memref.load %arg2[%c45] : memref<98xf32, #tpu.memory_space<smem>>
    %348 = vector.broadcast %347 : f32 to vector<1x256xf32>
    %349 = arith.mulf %348, %325 : vector<1x256xf32>
    %350 = arith.addf %346, %349 : vector<1x256xf32>
    %c255_i32_93 = arith.constant 255 : i32
    %351 = tpu.dynamic_rotate %325 by %c255_i32_93 dim 1 : vector<1x256xf32>, i32 -> vector<1x256xf32>
    %cst_94 = arith.constant 0.000000e+00 : f32
    %352 = vector.broadcast %cst_94 : f32 to vector<1x256xf32>
    %353 = arith.select %21, %351, %352 : vector<1x256xi1>, vector<1x256xf32>
    %c46 = arith.constant 46 : index
    %354 = memref.load %arg2[%c46] : memref<98xf32, #tpu.memory_space<smem>>
    %355 = vector.broadcast %354 : f32 to vector<1x256xf32>
    %356 = arith.mulf %355, %353 : vector<1x256xf32>
    %357 = arith.addf %350, %356 : vector<1x256xf32>
    %c254_i32_95 = arith.constant 254 : i32
    %358 = tpu.dynamic_rotate %325 by %c254_i32_95 dim 1 : vector<1x256xf32>, i32 -> vector<1x256xf32>
    %cst_96 = arith.constant 0.000000e+00 : f32
    %359 = vector.broadcast %cst_96 : f32 to vector<1x256xf32>
    %360 = arith.select %25, %358, %359 : vector<1x256xi1>, vector<1x256xf32>
    %c47 = arith.constant 47 : index
    %361 = memref.load %arg2[%c47] : memref<98xf32, #tpu.memory_space<smem>>
    %362 = vector.broadcast %361 : f32 to vector<1x256xf32>
    %363 = arith.mulf %362, %360 : vector<1x256xf32>
    %364 = arith.addf %357, %363 : vector<1x256xf32>
    %c253_i32_97 = arith.constant 253 : i32
    %365 = tpu.dynamic_rotate %325 by %c253_i32_97 dim 1 : vector<1x256xf32>, i32 -> vector<1x256xf32>
    %cst_98 = arith.constant 0.000000e+00 : f32
    %366 = vector.broadcast %cst_98 : f32 to vector<1x256xf32>
    %367 = arith.select %29, %365, %366 : vector<1x256xi1>, vector<1x256xf32>
    %c48 = arith.constant 48 : index
    %368 = memref.load %arg2[%c48] : memref<98xf32, #tpu.memory_space<smem>>
    %369 = vector.broadcast %368 : f32 to vector<1x256xf32>
    %370 = arith.mulf %369, %367 : vector<1x256xf32>
    %371 = arith.addf %364, %370 : vector<1x256xf32>
    %c48_i32_99 = arith.constant 48 : i32
    %372 = tpu.dynamic_rotate %2 by %c48_i32_99 dim 1 : vector<1x256xf32>, i32 -> vector<1x256xf32>
    %cst_100 = arith.constant 0.000000e+00 : f32
    %373 = vector.broadcast %cst_100 : f32 to vector<1x256xf32>
    %374 = arith.select %7, %372, %373 : vector<1x256xi1>, vector<1x256xf32>
    %c3_i32_101 = arith.constant 3 : i32
    %375 = tpu.dynamic_rotate %374 by %c3_i32_101 dim 1 : vector<1x256xf32>, i32 -> vector<1x256xf32>
    %cst_102 = arith.constant 0.000000e+00 : f32
    %376 = vector.broadcast %cst_102 : f32 to vector<1x256xf32>
    %377 = arith.select %9, %375, %376 : vector<1x256xi1>, vector<1x256xf32>
    %c49 = arith.constant 49 : index
    %378 = memref.load %arg2[%c49] : memref<98xf32, #tpu.memory_space<smem>>
    %379 = vector.broadcast %378 : f32 to vector<1x256xf32>
    %380 = arith.mulf %379, %377 : vector<1x256xf32>
    %381 = arith.addf %371, %380 : vector<1x256xf32>
    %c2_i32_103 = arith.constant 2 : i32
    %382 = tpu.dynamic_rotate %374 by %c2_i32_103 dim 1 : vector<1x256xf32>, i32 -> vector<1x256xf32>
    %cst_104 = arith.constant 0.000000e+00 : f32
    %383 = vector.broadcast %cst_104 : f32 to vector<1x256xf32>
    %384 = arith.select %13, %382, %383 : vector<1x256xi1>, vector<1x256xf32>
    %c50 = arith.constant 50 : index
    %385 = memref.load %arg2[%c50] : memref<98xf32, #tpu.memory_space<smem>>
    %386 = vector.broadcast %385 : f32 to vector<1x256xf32>
    %387 = arith.mulf %386, %384 : vector<1x256xf32>
    %388 = arith.addf %381, %387 : vector<1x256xf32>
    %c1_i32_105 = arith.constant 1 : i32
    %389 = tpu.dynamic_rotate %374 by %c1_i32_105 dim 1 : vector<1x256xf32>, i32 -> vector<1x256xf32>
    %cst_106 = arith.constant 0.000000e+00 : f32
    %390 = vector.broadcast %cst_106 : f32 to vector<1x256xf32>
    %391 = arith.select %17, %389, %390 : vector<1x256xi1>, vector<1x256xf32>
    %c51 = arith.constant 51 : index
    %392 = memref.load %arg2[%c51] : memref<98xf32, #tpu.memory_space<smem>>
    %393 = vector.broadcast %392 : f32 to vector<1x256xf32>
    %394 = arith.mulf %393, %391 : vector<1x256xf32>
    %395 = arith.addf %388, %394 : vector<1x256xf32>
    %c52 = arith.constant 52 : index
    %396 = memref.load %arg2[%c52] : memref<98xf32, #tpu.memory_space<smem>>
    %397 = vector.broadcast %396 : f32 to vector<1x256xf32>
    %398 = arith.mulf %397, %374 : vector<1x256xf32>
    %399 = arith.addf %395, %398 : vector<1x256xf32>
    %c255_i32_107 = arith.constant 255 : i32
    %400 = tpu.dynamic_rotate %374 by %c255_i32_107 dim 1 : vector<1x256xf32>, i32 -> vector<1x256xf32>
    %cst_108 = arith.constant 0.000000e+00 : f32
    %401 = vector.broadcast %cst_108 : f32 to vector<1x256xf32>
    %402 = arith.select %21, %400, %401 : vector<1x256xi1>, vector<1x256xf32>
    %c53 = arith.constant 53 : index
    %403 = memref.load %arg2[%c53] : memref<98xf32, #tpu.memory_space<smem>>
    %404 = vector.broadcast %403 : f32 to vector<1x256xf32>
    %405 = arith.mulf %404, %402 : vector<1x256xf32>
    %406 = arith.addf %399, %405 : vector<1x256xf32>
    %c254_i32_109 = arith.constant 254 : i32
    %407 = tpu.dynamic_rotate %374 by %c254_i32_109 dim 1 : vector<1x256xf32>, i32 -> vector<1x256xf32>
    %cst_110 = arith.constant 0.000000e+00 : f32
    %408 = vector.broadcast %cst_110 : f32 to vector<1x256xf32>
    %409 = arith.select %25, %407, %408 : vector<1x256xi1>, vector<1x256xf32>
    %c54 = arith.constant 54 : index
    %410 = memref.load %arg2[%c54] : memref<98xf32, #tpu.memory_space<smem>>
    %411 = vector.broadcast %410 : f32 to vector<1x256xf32>
    %412 = arith.mulf %411, %409 : vector<1x256xf32>
    %413 = arith.addf %406, %412 : vector<1x256xf32>
    %c253_i32_111 = arith.constant 253 : i32
    %414 = tpu.dynamic_rotate %374 by %c253_i32_111 dim 1 : vector<1x256xf32>, i32 -> vector<1x256xf32>
    %cst_112 = arith.constant 0.000000e+00 : f32
    %415 = vector.broadcast %cst_112 : f32 to vector<1x256xf32>
    %416 = arith.select %29, %414, %415 : vector<1x256xi1>, vector<1x256xf32>
    %c55 = arith.constant 55 : index
    %417 = memref.load %arg2[%c55] : memref<98xf32, #tpu.memory_space<smem>>
    %418 = vector.broadcast %417 : f32 to vector<1x256xf32>
    %419 = arith.mulf %418, %416 : vector<1x256xf32>
    %420 = arith.addf %413, %419 : vector<1x256xf32>
    %c32_i32_113 = arith.constant 32 : i32
    %421 = tpu.dynamic_rotate %2 by %c32_i32_113 dim 1 : vector<1x256xf32>, i32 -> vector<1x256xf32>
    %cst_114 = arith.constant 0.000000e+00 : f32
    %422 = vector.broadcast %cst_114 : f32 to vector<1x256xf32>
    %423 = arith.select %11, %421, %422 : vector<1x256xi1>, vector<1x256xf32>
    %c3_i32_115 = arith.constant 3 : i32
    %424 = tpu.dynamic_rotate %423 by %c3_i32_115 dim 1 : vector<1x256xf32>, i32 -> vector<1x256xf32>
    %cst_116 = arith.constant 0.000000e+00 : f32
    %425 = vector.broadcast %cst_116 : f32 to vector<1x256xf32>
    %426 = arith.select %9, %424, %425 : vector<1x256xi1>, vector<1x256xf32>
    %c56 = arith.constant 56 : index
    %427 = memref.load %arg2[%c56] : memref<98xf32, #tpu.memory_space<smem>>
    %428 = vector.broadcast %427 : f32 to vector<1x256xf32>
    %429 = arith.mulf %428, %426 : vector<1x256xf32>
    %430 = arith.addf %420, %429 : vector<1x256xf32>
    %c2_i32_117 = arith.constant 2 : i32
    %431 = tpu.dynamic_rotate %423 by %c2_i32_117 dim 1 : vector<1x256xf32>, i32 -> vector<1x256xf32>
    %cst_118 = arith.constant 0.000000e+00 : f32
    %432 = vector.broadcast %cst_118 : f32 to vector<1x256xf32>
    %433 = arith.select %13, %431, %432 : vector<1x256xi1>, vector<1x256xf32>
    %c57 = arith.constant 57 : index
    %434 = memref.load %arg2[%c57] : memref<98xf32, #tpu.memory_space<smem>>
    %435 = vector.broadcast %434 : f32 to vector<1x256xf32>
    %436 = arith.mulf %435, %433 : vector<1x256xf32>
    %437 = arith.addf %430, %436 : vector<1x256xf32>
    %c1_i32_119 = arith.constant 1 : i32
    %438 = tpu.dynamic_rotate %423 by %c1_i32_119 dim 1 : vector<1x256xf32>, i32 -> vector<1x256xf32>
    %cst_120 = arith.constant 0.000000e+00 : f32
    %439 = vector.broadcast %cst_120 : f32 to vector<1x256xf32>
    %440 = arith.select %17, %438, %439 : vector<1x256xi1>, vector<1x256xf32>
    %c58 = arith.constant 58 : index
    %441 = memref.load %arg2[%c58] : memref<98xf32, #tpu.memory_space<smem>>
    %442 = vector.broadcast %441 : f32 to vector<1x256xf32>
    %443 = arith.mulf %442, %440 : vector<1x256xf32>
    %444 = arith.addf %437, %443 : vector<1x256xf32>
    %c59 = arith.constant 59 : index
    %445 = memref.load %arg2[%c59] : memref<98xf32, #tpu.memory_space<smem>>
    %446 = vector.broadcast %445 : f32 to vector<1x256xf32>
    %447 = arith.mulf %446, %423 : vector<1x256xf32>
    %448 = arith.addf %444, %447 : vector<1x256xf32>
    %c255_i32_121 = arith.constant 255 : i32
    %449 = tpu.dynamic_rotate %423 by %c255_i32_121 dim 1 : vector<1x256xf32>, i32 -> vector<1x256xf32>
    %cst_122 = arith.constant 0.000000e+00 : f32
    %450 = vector.broadcast %cst_122 : f32 to vector<1x256xf32>
    %451 = arith.select %21, %449, %450 : vector<1x256xi1>, vector<1x256xf32>
    %c60 = arith.constant 60 : index
    %452 = memref.load %arg2[%c60] : memref<98xf32, #tpu.memory_space<smem>>
    %453 = vector.broadcast %452 : f32 to vector<1x256xf32>
    %454 = arith.mulf %453, %451 : vector<1x256xf32>
    %455 = arith.addf %448, %454 : vector<1x256xf32>
    %c254_i32_123 = arith.constant 254 : i32
    %456 = tpu.dynamic_rotate %423 by %c254_i32_123 dim 1 : vector<1x256xf32>, i32 -> vector<1x256xf32>
    %cst_124 = arith.constant 0.000000e+00 : f32
    %457 = vector.broadcast %cst_124 : f32 to vector<1x256xf32>
    %458 = arith.select %25, %456, %457 : vector<1x256xi1>, vector<1x256xf32>
    %c61 = arith.constant 61 : index
    %459 = memref.load %arg2[%c61] : memref<98xf32, #tpu.memory_space<smem>>
    %460 = vector.broadcast %459 : f32 to vector<1x256xf32>
    %461 = arith.mulf %460, %458 : vector<1x256xf32>
    %462 = arith.addf %455, %461 : vector<1x256xf32>
    %c253_i32_125 = arith.constant 253 : i32
    %463 = tpu.dynamic_rotate %423 by %c253_i32_125 dim 1 : vector<1x256xf32>, i32 -> vector<1x256xf32>
    %cst_126 = arith.constant 0.000000e+00 : f32
    %464 = vector.broadcast %cst_126 : f32 to vector<1x256xf32>
    %465 = arith.select %29, %463, %464 : vector<1x256xi1>, vector<1x256xf32>
    %c62 = arith.constant 62 : index
    %466 = memref.load %arg2[%c62] : memref<98xf32, #tpu.memory_space<smem>>
    %467 = vector.broadcast %466 : f32 to vector<1x256xf32>
    %468 = arith.mulf %467, %465 : vector<1x256xf32>
    %469 = arith.addf %462, %468 : vector<1x256xf32>
    %c16_i32_127 = arith.constant 16 : i32
    %470 = tpu.dynamic_rotate %2 by %c16_i32_127 dim 1 : vector<1x256xf32>, i32 -> vector<1x256xf32>
    %cst_128 = arith.constant 0.000000e+00 : f32
    %471 = vector.broadcast %cst_128 : f32 to vector<1x256xf32>
    %472 = arith.select %15, %470, %471 : vector<1x256xi1>, vector<1x256xf32>
    %c3_i32_129 = arith.constant 3 : i32
    %473 = tpu.dynamic_rotate %472 by %c3_i32_129 dim 1 : vector<1x256xf32>, i32 -> vector<1x256xf32>
    %cst_130 = arith.constant 0.000000e+00 : f32
    %474 = vector.broadcast %cst_130 : f32 to vector<1x256xf32>
    %475 = arith.select %9, %473, %474 : vector<1x256xi1>, vector<1x256xf32>
    %c63 = arith.constant 63 : index
    %476 = memref.load %arg2[%c63] : memref<98xf32, #tpu.memory_space<smem>>
    %477 = vector.broadcast %476 : f32 to vector<1x256xf32>
    %478 = arith.mulf %477, %475 : vector<1x256xf32>
    %479 = arith.addf %469, %478 : vector<1x256xf32>
    %c2_i32_131 = arith.constant 2 : i32
    %480 = tpu.dynamic_rotate %472 by %c2_i32_131 dim 1 : vector<1x256xf32>, i32 -> vector<1x256xf32>
    %cst_132 = arith.constant 0.000000e+00 : f32
    %481 = vector.broadcast %cst_132 : f32 to vector<1x256xf32>
    %482 = arith.select %13, %480, %481 : vector<1x256xi1>, vector<1x256xf32>
    %c64 = arith.constant 64 : index
    %483 = memref.load %arg2[%c64] : memref<98xf32, #tpu.memory_space<smem>>
    %484 = vector.broadcast %483 : f32 to vector<1x256xf32>
    %485 = arith.mulf %484, %482 : vector<1x256xf32>
    %486 = arith.addf %479, %485 : vector<1x256xf32>
    %c1_i32_133 = arith.constant 1 : i32
    %487 = tpu.dynamic_rotate %472 by %c1_i32_133 dim 1 : vector<1x256xf32>, i32 -> vector<1x256xf32>
    %cst_134 = arith.constant 0.000000e+00 : f32
    %488 = vector.broadcast %cst_134 : f32 to vector<1x256xf32>
    %489 = arith.select %17, %487, %488 : vector<1x256xi1>, vector<1x256xf32>
    %c65 = arith.constant 65 : index
    %490 = memref.load %arg2[%c65] : memref<98xf32, #tpu.memory_space<smem>>
    %491 = vector.broadcast %490 : f32 to vector<1x256xf32>
    %492 = arith.mulf %491, %489 : vector<1x256xf32>
    %493 = arith.addf %486, %492 : vector<1x256xf32>
    %c66 = arith.constant 66 : index
    %494 = memref.load %arg2[%c66] : memref<98xf32, #tpu.memory_space<smem>>
    %495 = vector.broadcast %494 : f32 to vector<1x256xf32>
    %496 = arith.mulf %495, %472 : vector<1x256xf32>
    %497 = arith.addf %493, %496 : vector<1x256xf32>
    %c255_i32_135 = arith.constant 255 : i32
    %498 = tpu.dynamic_rotate %472 by %c255_i32_135 dim 1 : vector<1x256xf32>, i32 -> vector<1x256xf32>
    %cst_136 = arith.constant 0.000000e+00 : f32
    %499 = vector.broadcast %cst_136 : f32 to vector<1x256xf32>
    %500 = arith.select %21, %498, %499 : vector<1x256xi1>, vector<1x256xf32>
    %c67 = arith.constant 67 : index
    %501 = memref.load %arg2[%c67] : memref<98xf32, #tpu.memory_space<smem>>
    %502 = vector.broadcast %501 : f32 to vector<1x256xf32>
    %503 = arith.mulf %502, %500 : vector<1x256xf32>
    %504 = arith.addf %497, %503 : vector<1x256xf32>
    %c254_i32_137 = arith.constant 254 : i32
    %505 = tpu.dynamic_rotate %472 by %c254_i32_137 dim 1 : vector<1x256xf32>, i32 -> vector<1x256xf32>
    %cst_138 = arith.constant 0.000000e+00 : f32
    %506 = vector.broadcast %cst_138 : f32 to vector<1x256xf32>
    %507 = arith.select %25, %505, %506 : vector<1x256xi1>, vector<1x256xf32>
    %c68 = arith.constant 68 : index
    %508 = memref.load %arg2[%c68] : memref<98xf32, #tpu.memory_space<smem>>
    %509 = vector.broadcast %508 : f32 to vector<1x256xf32>
    %510 = arith.mulf %509, %507 : vector<1x256xf32>
    %511 = arith.addf %504, %510 : vector<1x256xf32>
    %c253_i32_139 = arith.constant 253 : i32
    %512 = tpu.dynamic_rotate %472 by %c253_i32_139 dim 1 : vector<1x256xf32>, i32 -> vector<1x256xf32>
    %cst_140 = arith.constant 0.000000e+00 : f32
    %513 = vector.broadcast %cst_140 : f32 to vector<1x256xf32>
    %514 = arith.select %29, %512, %513 : vector<1x256xi1>, vector<1x256xf32>
    %c69 = arith.constant 69 : index
    %515 = memref.load %arg2[%c69] : memref<98xf32, #tpu.memory_space<smem>>
    %516 = vector.broadcast %515 : f32 to vector<1x256xf32>
    %517 = arith.mulf %516, %514 : vector<1x256xf32>
    %518 = arith.addf %511, %517 : vector<1x256xf32>
    %c3_i32_141 = arith.constant 3 : i32
    %519 = tpu.dynamic_rotate %2 by %c3_i32_141 dim 1 : vector<1x256xf32>, i32 -> vector<1x256xf32>
    %cst_142 = arith.constant 0.000000e+00 : f32
    %520 = vector.broadcast %cst_142 : f32 to vector<1x256xf32>
    %521 = arith.select %9, %519, %520 : vector<1x256xi1>, vector<1x256xf32>
    %c70 = arith.constant 70 : index
    %522 = memref.load %arg2[%c70] : memref<98xf32, #tpu.memory_space<smem>>
    %523 = vector.broadcast %522 : f32 to vector<1x256xf32>
    %524 = arith.mulf %523, %521 : vector<1x256xf32>
    %525 = arith.addf %518, %524 : vector<1x256xf32>
    %c2_i32_143 = arith.constant 2 : i32
    %526 = tpu.dynamic_rotate %2 by %c2_i32_143 dim 1 : vector<1x256xf32>, i32 -> vector<1x256xf32>
    %cst_144 = arith.constant 0.000000e+00 : f32
    %527 = vector.broadcast %cst_144 : f32 to vector<1x256xf32>
    %528 = arith.select %13, %526, %527 : vector<1x256xi1>, vector<1x256xf32>
    %c71 = arith.constant 71 : index
    %529 = memref.load %arg2[%c71] : memref<98xf32, #tpu.memory_space<smem>>
    %530 = vector.broadcast %529 : f32 to vector<1x256xf32>
    %531 = arith.mulf %530, %528 : vector<1x256xf32>
    %532 = arith.addf %525, %531 : vector<1x256xf32>
    %c1_i32_145 = arith.constant 1 : i32
    %533 = tpu.dynamic_rotate %2 by %c1_i32_145 dim 1 : vector<1x256xf32>, i32 -> vector<1x256xf32>
    %cst_146 = arith.constant 0.000000e+00 : f32
    %534 = vector.broadcast %cst_146 : f32 to vector<1x256xf32>
    %535 = arith.select %17, %533, %534 : vector<1x256xi1>, vector<1x256xf32>
    %c72 = arith.constant 72 : index
    %536 = memref.load %arg2[%c72] : memref<98xf32, #tpu.memory_space<smem>>
    %537 = vector.broadcast %536 : f32 to vector<1x256xf32>
    %538 = arith.mulf %537, %535 : vector<1x256xf32>
    %539 = arith.addf %532, %538 : vector<1x256xf32>
    %c73 = arith.constant 73 : index
    %540 = memref.load %arg2[%c73] : memref<98xf32, #tpu.memory_space<smem>>
    %541 = vector.broadcast %540 : f32 to vector<1x256xf32>
    %542 = arith.mulf %541, %2 : vector<1x256xf32>
    %543 = arith.addf %539, %542 : vector<1x256xf32>
    %c255_i32_147 = arith.constant 255 : i32
    %544 = tpu.dynamic_rotate %2 by %c255_i32_147 dim 1 : vector<1x256xf32>, i32 -> vector<1x256xf32>
    %cst_148 = arith.constant 0.000000e+00 : f32
    %545 = vector.broadcast %cst_148 : f32 to vector<1x256xf32>
    %546 = arith.select %21, %544, %545 : vector<1x256xi1>, vector<1x256xf32>
    %c74 = arith.constant 74 : index
    %547 = memref.load %arg2[%c74] : memref<98xf32, #tpu.memory_space<smem>>
    %548 = vector.broadcast %547 : f32 to vector<1x256xf32>
    %549 = arith.mulf %548, %546 : vector<1x256xf32>
    %550 = arith.addf %543, %549 : vector<1x256xf32>
    %c254_i32_149 = arith.constant 254 : i32
    %551 = tpu.dynamic_rotate %2 by %c254_i32_149 dim 1 : vector<1x256xf32>, i32 -> vector<1x256xf32>
    %cst_150 = arith.constant 0.000000e+00 : f32
    %552 = vector.broadcast %cst_150 : f32 to vector<1x256xf32>
    %553 = arith.select %25, %551, %552 : vector<1x256xi1>, vector<1x256xf32>
    %c75 = arith.constant 75 : index
    %554 = memref.load %arg2[%c75] : memref<98xf32, #tpu.memory_space<smem>>
    %555 = vector.broadcast %554 : f32 to vector<1x256xf32>
    %556 = arith.mulf %555, %553 : vector<1x256xf32>
    %557 = arith.addf %550, %556 : vector<1x256xf32>
    %c253_i32_151 = arith.constant 253 : i32
    %558 = tpu.dynamic_rotate %2 by %c253_i32_151 dim 1 : vector<1x256xf32>, i32 -> vector<1x256xf32>
    %cst_152 = arith.constant 0.000000e+00 : f32
    %559 = vector.broadcast %cst_152 : f32 to vector<1x256xf32>
    %560 = arith.select %29, %558, %559 : vector<1x256xi1>, vector<1x256xf32>
    %c76 = arith.constant 76 : index
    %561 = memref.load %arg2[%c76] : memref<98xf32, #tpu.memory_space<smem>>
    %562 = vector.broadcast %561 : f32 to vector<1x256xf32>
    %563 = arith.mulf %562, %560 : vector<1x256xf32>
    %564 = arith.addf %557, %563 : vector<1x256xf32>
    %c240_i32_153 = arith.constant 240 : i32
    %565 = tpu.dynamic_rotate %2 by %c240_i32_153 dim 1 : vector<1x256xf32>, i32 -> vector<1x256xf32>
    %cst_154 = arith.constant 0.000000e+00 : f32
    %566 = vector.broadcast %cst_154 : f32 to vector<1x256xf32>
    %567 = arith.select %19, %565, %566 : vector<1x256xi1>, vector<1x256xf32>
    %c3_i32_155 = arith.constant 3 : i32
    %568 = tpu.dynamic_rotate %567 by %c3_i32_155 dim 1 : vector<1x256xf32>, i32 -> vector<1x256xf32>
    %cst_156 = arith.constant 0.000000e+00 : f32
    %569 = vector.broadcast %cst_156 : f32 to vector<1x256xf32>
    %570 = arith.select %9, %568, %569 : vector<1x256xi1>, vector<1x256xf32>
    %c77 = arith.constant 77 : index
    %571 = memref.load %arg2[%c77] : memref<98xf32, #tpu.memory_space<smem>>
    %572 = vector.broadcast %571 : f32 to vector<1x256xf32>
    %573 = arith.mulf %572, %570 : vector<1x256xf32>
    %574 = arith.addf %564, %573 : vector<1x256xf32>
    %c2_i32_157 = arith.constant 2 : i32
    %575 = tpu.dynamic_rotate %567 by %c2_i32_157 dim 1 : vector<1x256xf32>, i32 -> vector<1x256xf32>
    %cst_158 = arith.constant 0.000000e+00 : f32
    %576 = vector.broadcast %cst_158 : f32 to vector<1x256xf32>
    %577 = arith.select %13, %575, %576 : vector<1x256xi1>, vector<1x256xf32>
    %c78 = arith.constant 78 : index
    %578 = memref.load %arg2[%c78] : memref<98xf32, #tpu.memory_space<smem>>
    %579 = vector.broadcast %578 : f32 to vector<1x256xf32>
    %580 = arith.mulf %579, %577 : vector<1x256xf32>
    %581 = arith.addf %574, %580 : vector<1x256xf32>
    %c1_i32_159 = arith.constant 1 : i32
    %582 = tpu.dynamic_rotate %567 by %c1_i32_159 dim 1 : vector<1x256xf32>, i32 -> vector<1x256xf32>
    %cst_160 = arith.constant 0.000000e+00 : f32
    %583 = vector.broadcast %cst_160 : f32 to vector<1x256xf32>
    %584 = arith.select %17, %582, %583 : vector<1x256xi1>, vector<1x256xf32>
    %c79 = arith.constant 79 : index
    %585 = memref.load %arg2[%c79] : memref<98xf32, #tpu.memory_space<smem>>
    %586 = vector.broadcast %585 : f32 to vector<1x256xf32>
    %587 = arith.mulf %586, %584 : vector<1x256xf32>
    %588 = arith.addf %581, %587 : vector<1x256xf32>
    %c80 = arith.constant 80 : index
    %589 = memref.load %arg2[%c80] : memref<98xf32, #tpu.memory_space<smem>>
    %590 = vector.broadcast %589 : f32 to vector<1x256xf32>
    %591 = arith.mulf %590, %567 : vector<1x256xf32>
    %592 = arith.addf %588, %591 : vector<1x256xf32>
    %c255_i32_161 = arith.constant 255 : i32
    %593 = tpu.dynamic_rotate %567 by %c255_i32_161 dim 1 : vector<1x256xf32>, i32 -> vector<1x256xf32>
    %cst_162 = arith.constant 0.000000e+00 : f32
    %594 = vector.broadcast %cst_162 : f32 to vector<1x256xf32>
    %595 = arith.select %21, %593, %594 : vector<1x256xi1>, vector<1x256xf32>
    %c81 = arith.constant 81 : index
    %596 = memref.load %arg2[%c81] : memref<98xf32, #tpu.memory_space<smem>>
    %597 = vector.broadcast %596 : f32 to vector<1x256xf32>
    %598 = arith.mulf %597, %595 : vector<1x256xf32>
    %599 = arith.addf %592, %598 : vector<1x256xf32>
    %c254_i32_163 = arith.constant 254 : i32
    %600 = tpu.dynamic_rotate %567 by %c254_i32_163 dim 1 : vector<1x256xf32>, i32 -> vector<1x256xf32>
    %cst_164 = arith.constant 0.000000e+00 : f32
    %601 = vector.broadcast %cst_164 : f32 to vector<1x256xf32>
    %602 = arith.select %25, %600, %601 : vector<1x256xi1>, vector<1x256xf32>
    %c82 = arith.constant 82 : index
    %603 = memref.load %arg2[%c82] : memref<98xf32, #tpu.memory_space<smem>>
    %604 = vector.broadcast %603 : f32 to vector<1x256xf32>
    %605 = arith.mulf %604, %602 : vector<1x256xf32>
    %606 = arith.addf %599, %605 : vector<1x256xf32>
    %c253_i32_165 = arith.constant 253 : i32
    %607 = tpu.dynamic_rotate %567 by %c253_i32_165 dim 1 : vector<1x256xf32>, i32 -> vector<1x256xf32>
    %cst_166 = arith.constant 0.000000e+00 : f32
    %608 = vector.broadcast %cst_166 : f32 to vector<1x256xf32>
    %609 = arith.select %29, %607, %608 : vector<1x256xi1>, vector<1x256xf32>
    %c83 = arith.constant 83 : index
    %610 = memref.load %arg2[%c83] : memref<98xf32, #tpu.memory_space<smem>>
    %611 = vector.broadcast %610 : f32 to vector<1x256xf32>
    %612 = arith.mulf %611, %609 : vector<1x256xf32>
    %613 = arith.addf %606, %612 : vector<1x256xf32>
    %c224_i32_167 = arith.constant 224 : i32
    %614 = tpu.dynamic_rotate %2 by %c224_i32_167 dim 1 : vector<1x256xf32>, i32 -> vector<1x256xf32>
    %cst_168 = arith.constant 0.000000e+00 : f32
    %615 = vector.broadcast %cst_168 : f32 to vector<1x256xf32>
    %616 = arith.select %23, %614, %615 : vector<1x256xi1>, vector<1x256xf32>
    %c3_i32_169 = arith.constant 3 : i32
    %617 = tpu.dynamic_rotate %616 by %c3_i32_169 dim 1 : vector<1x256xf32>, i32 -> vector<1x256xf32>
    %cst_170 = arith.constant 0.000000e+00 : f32
    %618 = vector.broadcast %cst_170 : f32 to vector<1x256xf32>
    %619 = arith.select %9, %617, %618 : vector<1x256xi1>, vector<1x256xf32>
    %c84 = arith.constant 84 : index
    %620 = memref.load %arg2[%c84] : memref<98xf32, #tpu.memory_space<smem>>
    %621 = vector.broadcast %620 : f32 to vector<1x256xf32>
    %622 = arith.mulf %621, %619 : vector<1x256xf32>
    %623 = arith.addf %613, %622 : vector<1x256xf32>
    %c2_i32_171 = arith.constant 2 : i32
    %624 = tpu.dynamic_rotate %616 by %c2_i32_171 dim 1 : vector<1x256xf32>, i32 -> vector<1x256xf32>
    %cst_172 = arith.constant 0.000000e+00 : f32
    %625 = vector.broadcast %cst_172 : f32 to vector<1x256xf32>
    %626 = arith.select %13, %624, %625 : vector<1x256xi1>, vector<1x256xf32>
    %c85 = arith.constant 85 : index
    %627 = memref.load %arg2[%c85] : memref<98xf32, #tpu.memory_space<smem>>
    %628 = vector.broadcast %627 : f32 to vector<1x256xf32>
    %629 = arith.mulf %628, %626 : vector<1x256xf32>
    %630 = arith.addf %623, %629 : vector<1x256xf32>
    %c1_i32_173 = arith.constant 1 : i32
    %631 = tpu.dynamic_rotate %616 by %c1_i32_173 dim 1 : vector<1x256xf32>, i32 -> vector<1x256xf32>
    %cst_174 = arith.constant 0.000000e+00 : f32
    %632 = vector.broadcast %cst_174 : f32 to vector<1x256xf32>
    %633 = arith.select %17, %631, %632 : vector<1x256xi1>, vector<1x256xf32>
    %c86 = arith.constant 86 : index
    %634 = memref.load %arg2[%c86] : memref<98xf32, #tpu.memory_space<smem>>
    %635 = vector.broadcast %634 : f32 to vector<1x256xf32>
    %636 = arith.mulf %635, %633 : vector<1x256xf32>
    %637 = arith.addf %630, %636 : vector<1x256xf32>
    %c87 = arith.constant 87 : index
    %638 = memref.load %arg2[%c87] : memref<98xf32, #tpu.memory_space<smem>>
    %639 = vector.broadcast %638 : f32 to vector<1x256xf32>
    %640 = arith.mulf %639, %616 : vector<1x256xf32>
    %641 = arith.addf %637, %640 : vector<1x256xf32>
    %c255_i32_175 = arith.constant 255 : i32
    %642 = tpu.dynamic_rotate %616 by %c255_i32_175 dim 1 : vector<1x256xf32>, i32 -> vector<1x256xf32>
    %cst_176 = arith.constant 0.000000e+00 : f32
    %643 = vector.broadcast %cst_176 : f32 to vector<1x256xf32>
    %644 = arith.select %21, %642, %643 : vector<1x256xi1>, vector<1x256xf32>
    %c88 = arith.constant 88 : index
    %645 = memref.load %arg2[%c88] : memref<98xf32, #tpu.memory_space<smem>>
    %646 = vector.broadcast %645 : f32 to vector<1x256xf32>
    %647 = arith.mulf %646, %644 : vector<1x256xf32>
    %648 = arith.addf %641, %647 : vector<1x256xf32>
    %c254_i32_177 = arith.constant 254 : i32
    %649 = tpu.dynamic_rotate %616 by %c254_i32_177 dim 1 : vector<1x256xf32>, i32 -> vector<1x256xf32>
    %cst_178 = arith.constant 0.000000e+00 : f32
    %650 = vector.broadcast %cst_178 : f32 to vector<1x256xf32>
    %651 = arith.select %25, %649, %650 : vector<1x256xi1>, vector<1x256xf32>
    %c89 = arith.constant 89 : index
    %652 = memref.load %arg2[%c89] : memref<98xf32, #tpu.memory_space<smem>>
    %653 = vector.broadcast %652 : f32 to vector<1x256xf32>
    %654 = arith.mulf %653, %651 : vector<1x256xf32>
    %655 = arith.addf %648, %654 : vector<1x256xf32>
    %c253_i32_179 = arith.constant 253 : i32
    %656 = tpu.dynamic_rotate %616 by %c253_i32_179 dim 1 : vector<1x256xf32>, i32 -> vector<1x256xf32>
    %cst_180 = arith.constant 0.000000e+00 : f32
    %657 = vector.broadcast %cst_180 : f32 to vector<1x256xf32>
    %658 = arith.select %29, %656, %657 : vector<1x256xi1>, vector<1x256xf32>
    %c90 = arith.constant 90 : index
    %659 = memref.load %arg2[%c90] : memref<98xf32, #tpu.memory_space<smem>>
    %660 = vector.broadcast %659 : f32 to vector<1x256xf32>
    %661 = arith.mulf %660, %658 : vector<1x256xf32>
    %662 = arith.addf %655, %661 : vector<1x256xf32>
    %c208_i32_181 = arith.constant 208 : i32
    %663 = tpu.dynamic_rotate %2 by %c208_i32_181 dim 1 : vector<1x256xf32>, i32 -> vector<1x256xf32>
    %cst_182 = arith.constant 0.000000e+00 : f32
    %664 = vector.broadcast %cst_182 : f32 to vector<1x256xf32>
    %665 = arith.select %27, %663, %664 : vector<1x256xi1>, vector<1x256xf32>
    %c3_i32_183 = arith.constant 3 : i32
    %666 = tpu.dynamic_rotate %665 by %c3_i32_183 dim 1 : vector<1x256xf32>, i32 -> vector<1x256xf32>
    %cst_184 = arith.constant 0.000000e+00 : f32
    %667 = vector.broadcast %cst_184 : f32 to vector<1x256xf32>
    %668 = arith.select %9, %666, %667 : vector<1x256xi1>, vector<1x256xf32>
    %c91 = arith.constant 91 : index
    %669 = memref.load %arg2[%c91] : memref<98xf32, #tpu.memory_space<smem>>
    %670 = vector.broadcast %669 : f32 to vector<1x256xf32>
    %671 = arith.mulf %670, %668 : vector<1x256xf32>
    %672 = arith.addf %662, %671 : vector<1x256xf32>
    %c2_i32_185 = arith.constant 2 : i32
    %673 = tpu.dynamic_rotate %665 by %c2_i32_185 dim 1 : vector<1x256xf32>, i32 -> vector<1x256xf32>
    %cst_186 = arith.constant 0.000000e+00 : f32
    %674 = vector.broadcast %cst_186 : f32 to vector<1x256xf32>
    %675 = arith.select %13, %673, %674 : vector<1x256xi1>, vector<1x256xf32>
    %c92 = arith.constant 92 : index
    %676 = memref.load %arg2[%c92] : memref<98xf32, #tpu.memory_space<smem>>
    %677 = vector.broadcast %676 : f32 to vector<1x256xf32>
    %678 = arith.mulf %677, %675 : vector<1x256xf32>
    %679 = arith.addf %672, %678 : vector<1x256xf32>
    %c1_i32_187 = arith.constant 1 : i32
    %680 = tpu.dynamic_rotate %665 by %c1_i32_187 dim 1 : vector<1x256xf32>, i32 -> vector<1x256xf32>
    %cst_188 = arith.constant 0.000000e+00 : f32
    %681 = vector.broadcast %cst_188 : f32 to vector<1x256xf32>
    %682 = arith.select %17, %680, %681 : vector<1x256xi1>, vector<1x256xf32>
    %c93 = arith.constant 93 : index
    %683 = memref.load %arg2[%c93] : memref<98xf32, #tpu.memory_space<smem>>
    %684 = vector.broadcast %683 : f32 to vector<1x256xf32>
    %685 = arith.mulf %684, %682 : vector<1x256xf32>
    %686 = arith.addf %679, %685 : vector<1x256xf32>
    %c94 = arith.constant 94 : index
    %687 = memref.load %arg2[%c94] : memref<98xf32, #tpu.memory_space<smem>>
    %688 = vector.broadcast %687 : f32 to vector<1x256xf32>
    %689 = arith.mulf %688, %665 : vector<1x256xf32>
    %690 = arith.addf %686, %689 : vector<1x256xf32>
    %c255_i32_189 = arith.constant 255 : i32
    %691 = tpu.dynamic_rotate %665 by %c255_i32_189 dim 1 : vector<1x256xf32>, i32 -> vector<1x256xf32>
    %cst_190 = arith.constant 0.000000e+00 : f32
    %692 = vector.broadcast %cst_190 : f32 to vector<1x256xf32>
    %693 = arith.select %21, %691, %692 : vector<1x256xi1>, vector<1x256xf32>
    %c95 = arith.constant 95 : index
    %694 = memref.load %arg2[%c95] : memref<98xf32, #tpu.memory_space<smem>>
    %695 = vector.broadcast %694 : f32 to vector<1x256xf32>
    %696 = arith.mulf %695, %693 : vector<1x256xf32>
    %697 = arith.addf %690, %696 : vector<1x256xf32>
    %c254_i32_191 = arith.constant 254 : i32
    %698 = tpu.dynamic_rotate %665 by %c254_i32_191 dim 1 : vector<1x256xf32>, i32 -> vector<1x256xf32>
    %cst_192 = arith.constant 0.000000e+00 : f32
    %699 = vector.broadcast %cst_192 : f32 to vector<1x256xf32>
    %700 = arith.select %25, %698, %699 : vector<1x256xi1>, vector<1x256xf32>
    %c96 = arith.constant 96 : index
    %701 = memref.load %arg2[%c96] : memref<98xf32, #tpu.memory_space<smem>>
    %702 = vector.broadcast %701 : f32 to vector<1x256xf32>
    %703 = arith.mulf %702, %700 : vector<1x256xf32>
    %704 = arith.addf %697, %703 : vector<1x256xf32>
    %c253_i32_193 = arith.constant 253 : i32
    %705 = tpu.dynamic_rotate %665 by %c253_i32_193 dim 1 : vector<1x256xf32>, i32 -> vector<1x256xf32>
    %cst_194 = arith.constant 0.000000e+00 : f32
    %706 = vector.broadcast %cst_194 : f32 to vector<1x256xf32>
    %707 = arith.select %29, %705, %706 : vector<1x256xi1>, vector<1x256xf32>
    %c97 = arith.constant 97 : index
    %708 = memref.load %arg2[%c97] : memref<98xf32, #tpu.memory_space<smem>>
    %709 = vector.broadcast %708 : f32 to vector<1x256xf32>
    %710 = arith.mulf %709, %707 : vector<1x256xf32>
    %711 = arith.addf %704, %710 : vector<1x256xf32>
    %712 = arith.negf %711 : vector<1x256xf32>
    %713 = math.exp %712 : vector<1x256xf32>
    %cst_195 = arith.constant 1.000000e+00 : f32
    %714 = vector.broadcast %cst_195 : f32 to vector<1x256xf32>
    %715 = arith.addf %714, %713 : vector<1x256xf32>
    %716 = arith.divf %714, %715 : vector<1x256xf32>
    %717 = vector.shape_cast %716 : vector<1x256xf32> to vector<1x1x256xf32>
    %718 = vector.broadcast %717 : vector<1x1x256xf32> to vector<1x4x256xf32>
    %719 = arith.mulf %0, %718 : vector<1x4x256xf32>
    %c0_196 = arith.constant 0 : index
    %c0_197 = arith.constant 0 : index
    %c0_198 = arith.constant 0 : index
    %720 = vector.load %arg4[%c0_196, %c0_197, %c0_198] : memref<1x4x256xf32, #tpu.memory_space<vmem>>, vector<1x4x256xf32>
    tpu.vector_store %arg4[%c0_196, %c0_197, %c0_198], %719 {strides = array<i32>} : memref<1x4x256xf32, #tpu.memory_space<vmem>>, vector<1x4x256xf32>,
    return
  }
  func.func @transform_0(%arg0: i32) -> (i32, i32, i32) {
    %c0_i32 = arith.constant 0 : i32
    %c0_i32_0 = arith.constant 0 : i32
    %c0_i32_1 = arith.constant 0 : i32
    return %arg0, %c0_i32, %c0_i32_0 : i32, i32, i32
  }
  func.func @transform_1(%arg0: i32) -> i32 {
    %c0_i32 = arith.constant 0 : i32
    %c0_i32_0 = arith.constant 0 : i32
    return %c0_i32 : i32
  }
  func.func @transform_2(%arg0: i32) -> i32 {
    %c0_i32 = arith.constant 0 : i32
    %c0_i32_0 = arith.constant 0 : i32
    return %c0_i32 : i32
  }
  func.func @transform_3(%arg0: i32) -> (i32, i32, i32) {
    %c0_i32 = arith.constant 0 : i32
    %c0_i32_0 = arith.constant 0 : i32
    %c0_i32_1 = arith.constant 0 : i32
    return %arg0, %c0_i32, %c0_i32_0 : i32, i32, i32
  }
}

</mosaic_0001>

<llo_original>
// kernel: tpu_custom_call.1
$region0: #{tpu_custom_call.1}
  #allocation0 [shape = 'u32[]', space=smem, size = 0x4, offset = 0x4, fixed_abs, tag = 'smem constant byte address 0x4 - core index']
  #allocation1 [shape = 'u32[144,128]{1,0:T(1,128)}', space=vmem, size = 0x12000, scoped, tag = 'internal scratch']
  #allocation2 [shape = 'f32[1]{0:T(128)S(6)}', space=smem, size = 0x200, scoped, tag = 'scoped memory for tpu_custom_call.1']
  %s0 = inlined_call_operand.hbm [shape: f32[2,4,256], index: 0, kind: input, shape index: {}]
  %s1 = inlined_call_operand.vmem [shape: f32[98], index: 1, kind: input, shape index: {}]
  %s2 = inlined_call_operand.<no memory space> [shape: f32[1], index: 2, kind: input, shape index: {}]
  %s3 = inlined_call_operand.hbm [shape: f32[2,4,256], index: 3, kind: output, shape index: {}]
  %s4 = sld [smem:[#allocation0]]
  $region53: #{tpu_custom_call.1} parent=0
    _
  %s6 = ssub.s32 1, %s4
  %s7 = scalar_select 0, %s6, %s4
  %8 = sst [smem:[#allocation2]] %s2
  $region1: #{tpu_custom_call.1} parent=0
    #allocation3 [shape = 'u8[8192]{0}', space=vmem, size = 0x2000, scoped, tag = 'input window, operand 0']
    #allocation4 [shape = 's32[2]{0}', space=sflag, size = 0x8, scoped, tag = 'scoped memory for tpu_custom_call.1']
    #allocation5 [shape = 's32[2]{0}', space=sflag, size = 0x8, scoped, tag = 'scoped memory for tpu_custom_call.1']
    #allocation6 [shape = 's32[2]{0}', space=sflag, size = 0x8, scoped, tag = 'scoped memory for tpu_custom_call.1']
    #allocation7 [shape = 'u8[512]{0}', space=smem, size = 0x200, scoped, tag = 'input window, operand 1, single buffered']
    #allocation8 [shape = 'u8[8192]{0}', space=vmem, size = 0x2000, scoped, tag = 'output window, operand 0']
    %9 = vsyncpa [#allocation4], 0
    %s10 = scalar_lea.sflag [#allocation4], 1
    %11 = vsyncpa %s10, 0
    %12 = vsyncpa [#allocation6], 0
    %13 = vsyncpa [#allocation5], 0
    %s14 = scalar_lea.sflag [#allocation5], 1
    %15 = vsyncpa %s14, 0
    loop: start=0, step=1, limit=4
    $region2: #{tpu_custom_call.1} parent=1 // loop_pre_header
      _
    $region3: #{tpu_custom_call.1} parent=1 // loop_header
      %s17 = sphi 0, %s21
      %p18 = scmp.ge.s32.totalorder %s17, 4
      %s27 = sphi 0, %s29
      %s30 = sphi 0, %s27
      %s31 = sphi 0, %s30
      %s47 = sphi 0, %s31
      %s51 = sphi 0, %s51
      %s53 = sphi 0, %s51
      %s54 = sphi 0, %s53
      %s68 = sphi 0, %s54
      %s72 = sphi 0, %s72
      %s74 = sphi 0, %s72
      %s75 = sphi 0, %s74
      %s89 = sphi 0, %s75
      %s95 = sphi 0, %s97
      %s98 = sphi 0, %s95
      %s99 = sphi 0, %s98
      %s115 = sphi 0, %s99
    $region4: #{tpu_custom_call.1} parent=1 // loop_header_branch
      %20 = sbr.rel (%p18) target = $region8
    $region5: #{tpu_custom_call.1} parent=1 // loop_body
      %s22 = ssub.s32 %s17, 1
      %s23 = ssub.s32 %s17, 2
      %s24 = sadd.s32 %s17, 1
      %s25 = ssub.s32 %s17, %s24
      %p26 = scmp.eq.s32.totalorder %s25, 0
      %s28 = sadd.s32 %s27, 1
      %s29 = scalar_select %p26, %s27, %s28
      %p32 = pneg %p26
      %p33 = scmp.eq.s32.totalorder %s17, 1
      %p34 = por %p32, %p33
      %p35 = scmp.ne.s32.totalorder %s27, %s30
      %p36 = scmp.eq.s32.totalorder %s17, 0
      %p37 = por %p35, %p36
      %p38 = scmp.ne.s32.totalorder %s27, %s30
      %p39 = scmp.eq.s32.totalorder %s22, 1
      %p40 = por %p38, %p39
      %p41 = scmp.ne.s32.totalorder %s30, %s31
      %p42 = scmp.eq.s32.totalorder %s22, 0
      %p43 = por %p41, %p42
      %p44 = scmp.ne.s32.totalorder %s30, %s31
      %p45 = scmp.eq.s32.totalorder %s23, 1
      %p46 = por %p44, %p45
      %p48 = scmp.ne.s32.totalorder %s31, %s47
      %p49 = scmp.eq.s32.totalorder %s23, 0
      %p50 = por %p48, %p49
      %s52 = sadd.s32 %s51, 1
      %p55 = scmp.eq.s32.totalorder %s17, 1
      %p56 = scmp.ne.s32.totalorder %s51, %s53
      %p57 = scmp.eq.s32.totalorder %s17, 0
      %p58 = por %p56, %p57
      %p59 = scmp.ne.s32.totalorder %s51, %s53
      %p60 = scmp.eq.s32.totalorder %s22, 1
      %p61 = por %p59, %p60
      %p62 = scmp.ne.s32.totalorder %s53, %s54
      %p63 = scmp.eq.s32.totalorder %s22, 0
      %p64 = por %p62, %p63
      %p65 = scmp.ne.s32.totalorder %s53, %s54
      %p66 = scmp.eq.s32.totalorder %s23, 1
      %p67 = por %p65, %p66
      %p69 = scmp.ne.s32.totalorder %s54, %s68
      %p70 = scmp.eq.s32.totalorder %s23, 0
      %p71 = por %p69, %p70
      %s73 = sadd.s32 %s72, 1
      %p76 = scmp.eq.s32.totalorder %s17, 1
      %p77 = scmp.ne.s32.totalorder %s72, %s74
      %p78 = scmp.eq.s32.totalorder %s17, 0
      %p79 = por %p77, %p78
      %p80 = scmp.ne.s32.totalorder %s72, %s74
      %p81 = scmp.eq.s32.totalorder %s22, 1
      %p82 = por %p80, %p81
      %p83 = scmp.ne.s32.totalorder %s74, %s75
      %p84 = scmp.eq.s32.totalorder %s22, 0
      %p85 = por %p83, %p84
      %p86 = scmp.ne.s32.totalorder %s74, %s75
      %p87 = scmp.eq.s32.totalorder %s23, 1
      %p88 = por %p86, %p87
      %p90 = scmp.ne.s32.totalorder %s75, %s89
      %p91 = scmp.eq.s32.totalorder %s23, 0
      %p92 = por %p90, %p91
      %s93 = ssub.s32 %s17, %s24
      %p94 = scmp.eq.s32.totalorder %s93, 0
      %s96 = sadd.s32 %s95, 1
      %s97 = scalar_select %p94, %s95, %s96
      %p100 = pneg %p94
      %p101 = scmp.eq.s32.totalorder %s17, 1
      %p102 = por %p100, %p101
      %p103 = scmp.ne.s32.totalorder %s95, %s98
      %p104 = scmp.eq.s32.totalorder %s17, 0
      %p105 = por %p103, %p104
      %p106 = scmp.ne.s32.totalorder %s95, %s98
      %p107 = scmp.eq.s32.totalorder %s22, 1
      %p108 = por %p106, %p107
      %p109 = scmp.ne.s32.totalorder %s98, %s99
      %p110 = scmp.eq.s32.totalorder %s22, 0
      %p111 = por %p109, %p110
      %p112 = scmp.ne.s32.totalorder %s98, %s99
      %p113 = scmp.eq.s32.totalorder %s23, 1
      %p114 = por %p112, %p113
      %p116 = scmp.ne.s32.totalorder %s99, %s115
      %p117 = scmp.eq.s32.totalorder %s23, 0
      %p118 = por %p116, %p117
      %p119 = scmp.le.s32.totalorder 1, %s17
      %p120 = scmp.lt.s32.totalorder %s17, 3
      %p121 = pnand %p119, %p120
      %p122 = pneg %p121
      // Predicated region
      $region9: #{tpu_custom_call.1} parent=5 // pred_check
        _
      $region10: #{tpu_custom_call.1} parent=5 // pred_check_branch
        %124 = sbr.rel (%p121) target = $region12
      $region11: #{tpu_custom_call.1} parent=5 // pred_region
        %s125 = ssub.s32 %s17, 1
        // Predicated region
        $region13: #{tpu_custom_call.1} parent=11 // pred_check
          %p126 = pneg %p64
        $region14: #{tpu_custom_call.1} parent=11 // pred_check_branch
          %128 = sbr.rel (%p126) target = $region16
        $region15: #{tpu_custom_call.1} parent=11 // pred_region
          %s130 = ssub.s32 16, 16
          %131 = vsyncadd [#allocation6], %s130
          %s133 = sshll.u32 %s1, 4
          %s134 = int_to_ptr.vmem [resolvable:$true] %s133
          %136 = dma.vmem_to_smem %s134, 16, [#allocation7], [#allocation6]
        $region16: #{tpu_custom_call.1} parent=11 // pred_fallthru
          _
        // Predicated region
        $region17: #{tpu_custom_call.1} parent=11 // pred_check
          %p137 = pneg %p85
        $region18: #{tpu_custom_call.1} parent=11 // pred_check_branch
          %139 = sbr.rel (%p137) target = $region20
        $region19: #{tpu_custom_call.1} parent=11 // pred_region
          _
        $region20: #{tpu_custom_call.1} parent=11 // pred_fallthru
          _
      $region12: #{tpu_custom_call.1} parent=5 // pred_fallthru
        _
      %p140 = scmp.lt.s32.totalorder %s17, 2
      // Predicated region
      $region21: #{tpu_custom_call.1} parent=5 // pred_check
        %p141 = pneg %p140
      $region22: #{tpu_custom_call.1} parent=5 // pred_check_branch
        %143 = sbr.rel (%p141) target = $region24
      $region23: #{tpu_custom_call.1} parent=5 // pred_region
        // Predicated region
        $region25: #{tpu_custom_call.1} parent=23 // pred_check
          %p144 = pneg %p37
        $region26: #{tpu_custom_call.1} parent=23 // pred_check_branch
          %146 = sbr.rel (%p144) target = $region28
        $region27: #{tpu_custom_call.1} parent=23 // pred_region
          %s147 = sand.u32 %s27, 1
          %s148 = scalar_lea.sflag [#allocation4], %s147
          %s149 = sand.u32 %s27, 1
          %s150 = smul.addr %s149, 8
          %s151 = scalar_lea.vmem [#allocation3], %s150
          %s153 = ssub.s32 128, 128
          %154 = vsyncadd %s148, %s153
          %s155 = smul.addr %s17, 2
          %s156 = smul.addr %s155, 64
          %s157 = scalar_lea.hbm %s0, %s156
          %s159 = sshll.u32 %s151, 4
          %s160 = int_to_ptr.vmem [resolvable:$true] %s159
          %162 = dma.hbm_to_vmem [thread:$0]  %s157, 128, %s160, %s148
        $region28: #{tpu_custom_call.1} parent=23 // pred_fallthru
          _
      $region24: #{tpu_custom_call.1} parent=5 // pred_fallthru
        _
      %p163 = scmp.le.s32.totalorder 1, %s17
      %p164 = scmp.lt.s32.totalorder %s17, 3
      %p165 = pnand %p163, %p164
      %p166 = pneg %p165
      // Predicated region
      $region29: #{tpu_custom_call.1} parent=5 // pred_check
        _
      $region30: #{tpu_custom_call.1} parent=5 // pred_check_branch
        %168 = sbr.rel (%p165) target = $region32
      $region31: #{tpu_custom_call.1} parent=5 // pred_region
        %s169 = ssub.s32 %s17, 1
        %s170 = sand.u32 %s30, 1
        %s171 = scalar_lea.sflag [#allocation4], %s170
        %s172 = sand.u32 %s30, 1
        %s173 = smul.addr %s172, 8
        %s174 = scalar_lea.vmem [#allocation3], %s173
        // Predicated region
        $region33: #{tpu_custom_call.1} parent=31 // pred_check
          %p175 = pneg %p43
        $region34: #{tpu_custom_call.1} parent=31 // pred_check_branch
          %177 = sbr.rel (%p175) target = $region36
        $region35: #{tpu_custom_call.1} parent=31 // pred_region
          %178 = dma.done %s171, 128
        $region36: #{tpu_custom_call.1} parent=31 // pred_fallthru
          _
        // Predicated region
        $region37: #{tpu_custom_call.1} parent=31 // pred_check
          %p179 = pneg %p64
        $region38: #{tpu_custom_call.1} parent=31 // pred_check_branch
          %181 = sbr.rel (%p179) target = $region40
        $region39: #{tpu_custom_call.1} parent=31 // pred_region
          %182 = dma.done [#allocation6], 16
        $region40: #{tpu_custom_call.1} parent=31 // pred_fallthru
          _
        %183 = sfence
        %s184 = sand.u32 %s30, 1
        %s185 = scalar_lea.sflag [#allocation4], %s184
        %s186 = sand.u32 %s30, 1
        %s187 = smul.addr %s186, 8
        %s188 = scalar_lea.vmem [#allocation3], %s187
        %p189 = pneg %p43
        %p190 = pneg %p40
        %p191 = pneg %p64
        %p192 = pneg %p61
        %p193 = pneg %p85
        %p194 = pneg %p82
        %p195 = pneg %p111
        %p196 = pneg %p108
        %s197 = sand.u32 %s98, 1
        %s198 = scalar_lea.sflag [#allocation5], %s197
        %s199 = sand.u32 %s98, 1
        %s200 = smul.addr %s199, 8
        %s201 = scalar_lea.vmem [#allocation8], %s200
        %v202 = vld [vmem:[%s174] sm:$0xff]
        %v204 = vcombine.high %v202, %v202
        %vm206 = vcmask 1043456
        %v207 = vsel %vm206, %v202, -inf
        %v208 = vrot.slane %v207, 4
        %v209 = vmax.f32 %v207, %v208
        %v210 = vrot.slane %v209, 2
        %v211 = vmax.f32 %v209, %v210
        %v212 = vrot.slane %v211, 1
        %v213 = vmax.f32 %v211, %v212
        %v214 = vsel %vm206, %v204, -inf
        %v215 = vrot.slane %v214, 4
        %v216 = vmax.f32 %v214, %v215
        %v217 = vrot.slane %v216, 2
        %v218 = vmax.f32 %v216, %v217
        %v219 = vrot.slane %v218, 1
        %v220 = vmax.f32 %v218, %v219
        %v221 = vsel %vm206, %v202, 0.0
        %v222 = vrot.slane %v221, 4
        %v223 = vadd.f32 %v221, %v222
        %v224 = vrot.slane %v223, 2
        %v225 = vadd.f32 %v223, %v224
        %v226 = vrot.slane %v225, 1
        %v227 = vadd.f32 %v225, %v226
        %v228 = vsel %vm206, %v204, 0.0
        %v229 = vrot.slane %v228, 4
        %v230 = vadd.f32 %v228, %v229
        %v231 = vrot.slane %v230, 2
        %v232 = vadd.f32 %v230, %v231
        %v233 = vrot.slane %v232, 1
        %v234 = vadd.f32 %v232, %v233
        %v235 = vlaneseq
        %v236 = vand.u32 %v235, 127
        %v237 = vadd.s32 %v236, 128
        %v238 = vand.u32 %v236, 15
        %v239 = vand.u32 %v237, 15
        %vm240 = vcmp.ge.s32.totalorder %v236, 48
        %vm241 = vcmp.ge.s32.totalorder %v237, 48
        %vm242 = vcmp.ge.s32.totalorder %v238, 3
        %vm243 = vcmp.ge.s32.totalorder %v239, 3
        %vm244 = vcmp.ge.s32.totalorder %v236, 32
        %vm245 = vcmp.ge.s32.totalorder %v237, 32
        %vm246 = vcmp.ge.s32.totalorder %v238, 2
        %vm247 = vcmp.ge.s32.totalorder %v239, 2
        %vm248 = vcmp.ge.s32.totalorder %v236, 16
        %vm249 = vcmp.ge.s32.totalorder %v237, 16
        %vm250 = vcmp.ge.s32.totalorder %v238, 1
        %vm251 = vcmp.ge.s32.totalorder %v239, 1
        %vm252 = vcmp.lt.s32.totalorder %v236, 240
        %vm253 = vcmp.lt.s32.totalorder %v237, 240
        %vm254 = vcmp.lt.s32.totalorder %v238, 15
        %vm255 = vcmp.lt.s32.totalorder %v239, 15
        %vm256 = vcmp.lt.s32.totalorder %v236, 224
        %vm257 = vcmp.lt.s32.totalorder %v237, 224
        %vm258 = vcmp.lt.s32.totalorder %v238, 14
        %vm259 = vcmp.lt.s32.totalorder %v239, 14
        %vm260 = vcmp.lt.s32.totalorder %v236, 208
        %vm261 = vcmp.lt.s32.totalorder %v237, 208
        %vm262 = vcmp.lt.s32.totalorder %v238, 13
        %vm263 = vcmp.lt.s32.totalorder %v239, 13
        %s264 = sld [smem:[#allocation2]]
        %v265 = vstv %s264
        %266 = vrot.lane.b32.xlu0 %v213, 48
        %v267 = vpop.permute.xlu0 %266
        %268 = vrot.lane.b32.xlu0 %v220, 48
        %v269 = vpop.permute.xlu0 %268
        %vm270 = vcmp.lt.s32.totalorder %v236, 48
        %v271 = vsel %vm270, %v267, %v269
        %v272 = vsel %vm270, %v269, %v267
        %v273 = vsel %vm240, %v272, 0.0
        %v274 = vsel %vm241, %v271, 0.0
        %275 = vrot.lane.b32.xlu0 %v273, 3
        %v276 = vpop.permute.xlu0 %275
        %277 = vrot.lane.b32.xlu0 %v274, 3
        %v278 = vpop.permute.xlu0 %277
        %vm279 = vcmp.lt.s32.totalorder %v236, 3
        %v280 = vsel %vm279, %v276, %v278
        %v281 = vsel %vm279, %v278, %v276
        %v282 = vsel %vm242, %v281, 0.0
        %v283 = vsel %vm243, %v280, 0.0
        %s284 = sld [smem:[#allocation7]]
        %v285 = vstv %s284
        %v286 = vmul.f32 %v285, %v282
        %v287 = vmul.f32 %v285, %v283
        %v288 = vadd.f32 %v265, %v286
        %v289 = vadd.f32 %v265, %v287
        %290 = vrot.lane.b32.xlu0 %v273, 2
        %v291 = vpop.permute.xlu0 %290
        %292 = vrot.lane.b32.xlu0 %v274, 2
        %v293 = vpop.permute.xlu0 %292
        %vm294 = vcmp.lt.s32.totalorder %v236, 2
        %v295 = vsel %vm294, %v291, %v293
        %v296 = vsel %vm294, %v293, %v291
        %v297 = vsel %vm246, %v296, 0.0
        %v298 = vsel %vm247, %v295, 0.0
        %s299 = sld [smem:[#allocation7 + $0x1]]
        %v300 = vstv %s299
        %v301 = vmul.f32 %v300, %v297
        %v302 = vmul.f32 %v300, %v298
        %v303 = vadd.f32 %v288, %v301
        %v304 = vadd.f32 %v289, %v302
        %305 = vrot.lane.b32.xlu0 %v273, 1
        %v306 = vpop.permute.xlu0 %305
        %307 = vrot.lane.b32.xlu0 %v274, 1
        %v308 = vpop.permute.xlu0 %307
        %vm309 = vcmp.lt.s32.totalorder %v236, 1
        %v310 = vsel %vm309, %v306, %v308
        %v311 = vsel %vm309, %v308, %v306
        %v312 = vsel %vm250, %v311, 0.0
        %v313 = vsel %vm251, %v310, 0.0
        %s314 = sld [smem:[#allocation7 + $0x2]]
        %v315 = vstv %s314
        %v316 = vmul.f32 %v315, %v312
        %v317 = vmul.f32 %v315, %v313
        %v318 = vadd.f32 %v303, %v316
        %v319 = vadd.f32 %v304, %v317
        %s320 = sld [smem:[#allocation7 + $0x3]]
        %v321 = vstv %s320
        %v322 = vmul.f32 %v321, %v273
        %v323 = vmul.f32 %v321, %v274
        %v324 = vadd.f32 %v318, %v322
        %v325 = vadd.f32 %v319, %v323
        %326 = vrot.lane.b32.xlu0 %v273, 127
        %v327 = vpop.permute.xlu0 %326
        %328 = vrot.lane.b32.xlu0 %v274, 127
        %v329 = vpop.permute.xlu0 %328
        %vm330 = vcmp.lt.s32.totalorder %v236, 127
        %v331 = vsel %vm330, %v327, %v329
        %v332 = vsel %vm330, %v329, %v327
        %v333 = vsel %vm254, %v331, 0.0
        %v334 = vsel %vm255, %v332, 0.0
        %s335 = sld [smem:[#allocation7 + $0x4]]
        %v336 = vstv %s335
        %v337 = vmul.f32 %v336, %v333
        %v338 = vmul.f32 %v336, %v334
        %v339 = vadd.f32 %v324, %v337
        %v340 = vadd.f32 %v325, %v338
        %341 = vrot.lane.b32.xlu0 %v273, 126
        %v342 = vpop.permute.xlu0 %341
        %343 = vrot.lane.b32.xlu0 %v274, 126
        %v344 = vpop.permute.xlu0 %343
        %vm345 = vcmp.lt.s32.totalorder %v236, 126
        %v346 = vsel %vm345, %v342, %v344
        %v347 = vsel %vm345, %v344, %v342
        %v348 = vsel %vm258, %v346, 0.0
        %v349 = vsel %vm259, %v347, 0.0
        %s350 = sld [smem:[#allocation7 + $0x5]]
        %v351 = vstv %s350
        %v352 = vmul.f32 %v351, %v348
        %v353 = vmul.f32 %v351, %v349
        %v354 = vadd.f32 %v339, %v352
        %v355 = vadd.f32 %v340, %v353
        %356 = vrot.lane.b32.xlu0 %v273, 125
        %v357 = vpop.permute.xlu0 %356
        %358 = vrot.lane.b32.xlu0 %v274, 125
        %v359 = vpop.permute.xlu0 %358
        %vm360 = vcmp.lt.s32.totalorder %v236, 125
        %v361 = vsel %vm360, %v357, %v359
        %v362 = vsel %vm360, %v359, %v357
        %v363 = vsel %vm262, %v361, 0.0
        %v364 = vsel %vm263, %v362, 0.0
        %s365 = sld [smem:[#allocation7 + $0x6]]
        %v366 = vstv %s365
        %v367 = vmul.f32 %v366, %v363
        %v368 = vmul.f32 %v366, %v364
        %v369 = vadd.f32 %v354, %v367
        %v370 = vadd.f32 %v355, %v368
        %371 = vrot.lane.b32.xlu0 %v213, 32
        %v372 = vpop.permute.xlu0 %371
        %373 = vrot.lane.b32.xlu0 %v220, 32
        %v374 = vpop.permute.xlu0 %373
        %vm375 = vcmp.lt.s32.totalorder %v236, 32
        %v376 = vsel %vm375, %v372, %v374
        %v377 = vsel %vm375, %v374, %v372
        %v378 = vsel %vm244, %v377, 0.0
        %v379 = vsel %vm245, %v376, 0.0
        %380 = vrot.lane.b32.xlu0 %v378, 3
        %v381 = vpop.permute.xlu0 %380
        %382 = vrot.lane.b32.xlu0 %v379, 3
        %v383 = vpop.permute.xlu0 %382
        %v384 = vsel %vm279, %v381, %v383
        %v385 = vsel %vm279, %v383, %v381
        %v386 = vsel %vm242, %v385, 0.0
        %v387 = vsel %vm243, %v384, 0.0
        %s388 = sld [smem:[#allocation7 + $0x7]]
        %v389 = vstv %s388
        %v390 = vmul.f32 %v389, %v386
        %v391 = vmul.f32 %v389, %v387
        %v392 = vadd.f32 %v369, %v390
        %v393 = vadd.f32 %v370, %v391
        %394 = vrot.lane.b32.xlu0 %v378, 2
        %v395 = vpop.permute.xlu0 %394
        %396 = vrot.lane.b32.xlu0 %v379, 2
        %v397 = vpop.permute.xlu0 %396
        %v398 = vsel %vm294, %v395, %v397
        %v399 = vsel %vm294, %v397, %v395
        %v400 = vsel %vm246, %v399, 0.0
        %v401 = vsel %vm247, %v398, 0.0
        %s402 = sld [smem:[#allocation7 + $0x8]]
        %v403 = vstv %s402
        %v404 = vmul.f32 %v403, %v400
        %v405 = vmul.f32 %v403, %v401
        %v406 = vadd.f32 %v392, %v404
        %v407 = vadd.f32 %v393, %v405
        %408 = vrot.lane.b32.xlu0 %v378, 1
        %v409 = vpop.permute.xlu0 %408
        %410 = vrot.lane.b32.xlu0 %v379, 1
        %v411 = vpop.permute.xlu0 %410
        %v412 = vsel %vm309, %v409, %v411
        %v413 = vsel %vm309, %v411, %v409
        %v414 = vsel %vm250, %v413, 0.0
        %v415 = vsel %vm251, %v412, 0.0
        %s416 = sld [smem:[#allocation7 + $0x9]]
        %v417 = vstv %s416
        %v418 = vmul.f32 %v417, %v414
        %v419 = vmul.f32 %v417, %v415
        %v420 = vadd.f32 %v406, %v418
        %v421 = vadd.f32 %v407, %v419
        %s422 = sld [smem:[#allocation7 + $0xa]]
        %v423 = vstv %s422
        %v424 = vmul.f32 %v423, %v378
        %v425 = vmul.f32 %v423, %v379
        %v426 = vadd.f32 %v420, %v424
        %v427 = vadd.f32 %v421, %v425
        %428 = vrot.lane.b32.xlu0 %v378, 127
        %v429 = vpop.permute.xlu0 %428
        %430 = vrot.lane.b32.xlu0 %v379, 127
        %v431 = vpop.permute.xlu0 %430
        %v432 = vsel %vm330, %v429, %v431
        %v433 = vsel %vm330, %v431, %v429
        %v434 = vsel %vm254, %v432, 0.0
        %v435 = vsel %vm255, %v433, 0.0
        %s436 = sld [smem:[#allocation7 + $0xb]]
        %v437 = vstv %s436
        %v438 = vmul.f32 %v437, %v434
        %v439 = vmul.f32 %v437, %v435
        %v440 = vadd.f32 %v426, %v438
        %v441 = vadd.f32 %v427, %v439
        %442 = vrot.lane.b32.xlu0 %v378, 126
        %v443 = vpop.permute.xlu0 %442
        %444 = vrot.lane.b32.xlu0 %v379, 126
        %v445 = vpop.permute.xlu0 %444
        %v446 = vsel %vm345, %v443, %v445
        %v447 = vsel %vm345, %v445, %v443
        %v448 = vsel %vm258, %v446, 0.0
        %v449 = vsel %vm259, %v447, 0.0
        %s450 = sld [smem:[#allocation7 + $0xc]]
        %v451 = vstv %s450
        %v452 = vmul.f32 %v451, %v448
        %v453 = vmul.f32 %v451, %v449
        %v454 = vadd.f32 %v440, %v452
        %v455 = vadd.f32 %v441, %v453
        %456 = vrot.lane.b32.xlu0 %v378, 125
        %v457 = vpop.permute.xlu0 %456
        %458 = vrot.lane.b32.xlu0 %v379, 125
        %v459 = vpop.permute.xlu0 %458
        %v460 = vsel %vm360, %v457, %v459
        %v461 = vsel %vm360, %v459, %v457
        %v462 = vsel %vm262, %v460, 0.0
        %v463 = vsel %vm263, %v461, 0.0
        %s464 = sld [smem:[#allocation7 + $0xd]]
        %v465 = vstv %s464
        %v466 = vmul.f32 %v465, %v462
        %v467 = vmul.f32 %v465, %v463
        %v468 = vadd.f32 %v454, %v466
        %v469 = vadd.f32 %v455, %v467
        %470 = vrot.lane.b32.xlu0 %v213, 16
        %v471 = vpop.permute.xlu0 %470
        %472 = vrot.lane.b32.xlu0 %v220, 16
        %v473 = vpop.permute.xlu0 %472
        %vm474 = vcmp.lt.s32.totalorder %v236, 16
        %v475 = vsel %vm474, %v471, %v473
        %v476 = vsel %vm474, %v473, %v471
        %v477 = vsel %vm248, %v476, 0.0
        %v478 = vsel %vm249, %v475, 0.0
        %479 = vrot.lane.b32.xlu0 %v477, 3
        %v480 = vpop.permute.xlu0 %479
        %481 = vrot.lane.b32.xlu0 %v478, 3
        %v482 = vpop.permute.xlu0 %481
        %v483 = vsel %vm279, %v480, %v482
        %v484 = vsel %vm279, %v482, %v480
        %v485 = vsel %vm242, %v484, 0.0
        %v486 = vsel %vm243, %v483, 0.0
        %s487 = sld [smem:[#allocation7 + $0xe]]
        %v488 = vstv %s487
        %v489 = vmul.f32 %v488, %v485
        %v490 = vmul.f32 %v488, %v486
        %v491 = vadd.f32 %v468, %v489
        %v492 = vadd.f32 %v469, %v490
        %493 = vrot.lane.b32.xlu0 %v477, 2
        %v494 = vpop.permute.xlu0 %493
        %495 = vrot.lane.b32.xlu0 %v478, 2
        %v496 = vpop.permute.xlu0 %495
        %v497 = vsel %vm294, %v494, %v496
        %v498 = vsel %vm294, %v496, %v494
        %v499 = vsel %vm246, %v498, 0.0
        %v500 = vsel %vm247, %v497, 0.0
        %s501 = sld [smem:[#allocation7 + $0xf]]
        %v502 = vstv %s501
        %v503 = vmul.f32 %v502, %v499
        %v504 = vmul.f32 %v502, %v500
        %v505 = vadd.f32 %v491, %v503
        %v506 = vadd.f32 %v492, %v504
        %507 = vrot.lane.b32.xlu0 %v477, 1
        %v508 = vpop.permute.xlu0 %507
        %509 = vrot.lane.b32.xlu0 %v478, 1
        %v510 = vpop.permute.xlu0 %509
        %v511 = vsel %vm309, %v508, %v510
        %v512 = vsel %vm309, %v510, %v508
        %v513 = vsel %vm250, %v512, 0.0
        %v514 = vsel %vm251, %v511, 0.0
        %s515 = sld [smem:[#allocation7 + $0x10]]
        %v516 = vstv %s515
        %v517 = vmul.f32 %v516, %v513
        %v518 = vmul.f32 %v516, %v514
        %v519 = vadd.f32 %v505, %v517
        %v520 = vadd.f32 %v506, %v518
        %s521 = sld [smem:[#allocation7 + $0x11]]
        %v522 = vstv %s521
        %v523 = vmul.f32 %v522, %v477
        %v524 = vmul.f32 %v522, %v478
        %v525 = vadd.f32 %v519, %v523
        %v526 = vadd.f32 %v520, %v524
        %527 = vrot.lane.b32.xlu0 %v477, 127
        %v528 = vpop.permute.xlu0 %527
        %529 = vrot.lane.b32.xlu0 %v478, 127
        %v530 = vpop.permute.xlu0 %529
        %v531 = vsel %vm330, %v528, %v530
        %v532 = vsel %vm330, %v530, %v528
        %v533 = vsel %vm254, %v531, 0.0
        %v534 = vsel %vm255, %v532, 0.0
        %s535 = sld [smem:[#allocation7 + $0x12]]
        %v536 = vstv %s535
        %v537 = vmul.f32 %v536, %v533
        %v538 = vmul.f32 %v536, %v534
        %v539 = vadd.f32 %v525, %v537
        %v540 = vadd.f32 %v526, %v538
        %541 = vrot.lane.b32.xlu0 %v477, 126
        %v542 = vpop.permute.xlu0 %541
        %543 = vrot.lane.b32.xlu0 %v478, 126
        %v544 = vpop.permute.xlu0 %543
        %v545 = vsel %vm345, %v542, %v544
        %v546 = vsel %vm345, %v544, %v542
        %v547 = vsel %vm258, %v545, 0.0
        %v548 = vsel %vm259, %v546, 0.0
        %s549 = sld [smem:[#allocation7 + $0x13]]
        %v550 = vstv %s549
        %v551 = vmul.f32 %v550, %v547
        %v552 = vmul.f32 %v550, %v548
        %v553 = vadd.f32 %v539, %v551
        %v554 = vadd.f32 %v540, %v552
        %555 = vrot.lane.b32.xlu0 %v477, 125
        %v556 = vpop.permute.xlu0 %555
        %557 = vrot.lane.b32.xlu0 %v478, 125
        %v558 = vpop.permute.xlu0 %557
        %v559 = vsel %vm360, %v556, %v558
        %v560 = vsel %vm360, %v558, %v556
        %v561 = vsel %vm262, %v559, 0.0
        %v562 = vsel %vm263, %v560, 0.0
        %s563 = sld [smem:[#allocation7 + $0x14]]
        %v564 = vstv %s563
        %v565 = vmul.f32 %v564, %v561
        %v566 = vmul.f32 %v564, %v562
        %v567 = vadd.f32 %v553, %v565
        %v568 = vadd.f32 %v554, %v566
        %569 = vrot.lane.b32.xlu0 %v213, 3
        %v570 = vpop.permute.xlu0 %569
        %571 = vrot.lane.b32.xlu0 %v220, 3
        %v572 = vpop.permute.xlu0 %571
        %v573 = vsel %vm279, %v570, %v572
        %v574 = vsel %vm279, %v572, %v570
        %v575 = vsel %vm242, %v574, 0.0
        %v576 = vsel %vm243, %v573, 0.0
        %s577 = sld [smem:[#allocation7 + $0x15]]
        %v578 = vstv %s577
        %v579 = vmul.f32 %v578, %v575
        %v580 = vmul.f32 %v578, %v576
        %v581 = vadd.f32 %v567, %v579
        %v582 = vadd.f32 %v568, %v580
        %583 = vrot.lane.b32.xlu0 %v213, 2
        %v584 = vpop.permute.xlu0 %583
        %585 = vrot.lane.b32.xlu0 %v220, 2
        %v586 = vpop.permute.xlu0 %585
        %v587 = vsel %vm294, %v584, %v586
        %v588 = vsel %vm294, %v586, %v584
        %v589 = vsel %vm246, %v588, 0.0
        %v590 = vsel %vm247, %v587, 0.0
        %s591 = sld [smem:[#allocation7 + $0x16]]
        %v592 = vstv %s591
        %v593 = vmul.f32 %v592, %v589
        %v594 = vmul.f32 %v592, %v590
        %v595 = vadd.f32 %v581, %v593
        %v596 = vadd.f32 %v582, %v594
        %597 = vrot.lane.b32.xlu0 %v213, 1
        %v598 = vpop.permute.xlu0 %597
        %599 = vrot.lane.b32.xlu0 %v220, 1
        %v600 = vpop.permute.xlu0 %599
        %v601 = vsel %vm309, %v598, %v600
        %v602 = vsel %vm309, %v600, %v598
        %v603 = vsel %vm250, %v602, 0.0
        %v604 = vsel %vm251, %v601, 0.0
        %s605 = sld [smem:[#allocation7 + $0x17]]
        %v606 = vstv %s605
        %v607 = vmul.f32 %v606, %v603
        %v608 = vmul.f32 %v606, %v604
        %v609 = vadd.f32 %v595, %v607
        %v610 = vadd.f32 %v596, %v608
        %s611 = sld [smem:[#allocation7 + $0x18]]
        %v612 = vstv %s611
        %v613 = vmul.f32 %v612, %v213
        %v614 = vmul.f32 %v612, %v220
        %v615 = vadd.f32 %v609, %v613
        %v616 = vadd.f32 %v610, %v614
        %617 = vrot.lane.b32.xlu0 %v213, 127
        %v618 = vpop.permute.xlu0 %617
        %619 = vrot.lane.b32.xlu0 %v220, 127
        %v620 = vpop.permute.xlu0 %619
        %v621 = vsel %vm330, %v618, %v620
        %v622 = vsel %vm330, %v620, %v618
        %v623 = vsel %vm254, %v621, 0.0
        %v624 = vsel %vm255, %v622, 0.0
        %s625 = sld [smem:[#allocation7 + $0x19]]
        %v626 = vstv %s625
        %v627 = vmul.f32 %v626, %v623
        %v628 = vmul.f32 %v626, %v624
        %v629 = vadd.f32 %v615, %v627
        %v630 = vadd.f32 %v616, %v628
        %631 = vrot.lane.b32.xlu0 %v213, 126
        %v632 = vpop.permute.xlu0 %631
        %633 = vrot.lane.b32.xlu0 %v220, 126
        %v634 = vpop.permute.xlu0 %633
        %v635 = vsel %vm345, %v632, %v634
        %v636 = vsel %vm345, %v634, %v632
        %v637 = vsel %vm258, %v635, 0.0
        %v638 = vsel %vm259, %v636, 0.0
        %s639 = sld [smem:[#allocation7 + $0x1a]]
        %v640 = vstv %s639
        %v641 = vmul.f32 %v640, %v637
        %v642 = vmul.f32 %v640, %v638
        %v643 = vadd.f32 %v629, %v641
        %v644 = vadd.f32 %v630, %v642
        %645 = vrot.lane.b32.xlu0 %v213, 125
        %v646 = vpop.permute.xlu0 %645
        %647 = vrot.lane.b32.xlu0 %v220, 125
        %v648 = vpop.permute.xlu0 %647
        %v649 = vsel %vm360, %v646, %v648
        %v650 = vsel %vm360, %v648, %v646
        %v651 = vsel %vm262, %v649, 0.0
        %v652 = vsel %vm263, %v650, 0.0
        %s653 = sld [smem:[#allocation7 + $0x1b]]
        %v654 = vstv %s653
        %v655 = vmul.f32 %v654, %v651
        %v656 = vmul.f32 %v654, %v652
        %v657 = vadd.f32 %v643, %v655
        %v658 = vadd.f32 %v644, %v656
        %659 = vrot.lane.b32.xlu0 %v213, 112
        %v660 = vpop.permute.xlu0 %659
        %661 = vrot.lane.b32.xlu0 %v220, 112
        %v662 = vpop.permute.xlu0 %661
        %vm663 = vcmp.lt.s32.totalorder %v236, 112
        %v664 = vsel %vm663, %v660, %v662
        %v665 = vsel %vm663, %v662, %v660
        %v666 = vsel %vm252, %v664, 0.0
        %v667 = vsel %vm253, %v665, 0.0
        %668 = vrot.lane.b32.xlu0 %v666, 3
        %v669 = vpop.permute.xlu0 %668
        %670 = vrot.lane.b32.xlu0 %v667, 3
        %v671 = vpop.permute.xlu0 %670
        %v672 = vsel %vm279, %v669, %v671
        %v673 = vsel %vm279, %v671, %v669
        %v674 = vsel %vm242, %v673, 0.0
        %v675 = vsel %vm243, %v672, 0.0
        %s676 = sld [smem:[#allocation7 + $0x1c]]
        %v677 = vstv %s676
        %v678 = vmul.f32 %v677, %v674
        %v679 = vmul.f32 %v677, %v675
        %v680 = vadd.f32 %v657, %v678
        %v681 = vadd.f32 %v658, %v679
        %682 = vrot.lane.b32.xlu0 %v666, 2
        %v683 = vpop.permute.xlu0 %682
        %684 = vrot.lane.b32.xlu0 %v667, 2
        %v685 = vpop.permute.xlu0 %684
        %v686 = vsel %vm294, %v683, %v685
        %v687 = vsel %vm294, %v685, %v683
        %v688 = vsel %vm246, %v687, 0.0
        %v689 = vsel %vm247, %v686, 0.0
        %s690 = sld [smem:[#allocation7 + $0x1d]]
        %v691 = vstv %s690
        %v692 = vmul.f32 %v691, %v688
        %v693 = vmul.f32 %v691, %v689
        %v694 = vadd.f32 %v680, %v692
        %v695 = vadd.f32 %v681, %v693
        %696 = vrot.lane.b32.xlu0 %v666, 1
        %v697 = vpop.permute.xlu0 %696
        %698 = vrot.lane.b32.xlu0 %v667, 1
        %v699 = vpop.permute.xlu0 %698
        %v700 = vsel %vm309, %v697, %v699
        %v701 = vsel %vm309, %v699, %v697
        %v702 = vsel %vm250, %v701, 0.0
        %v703 = vsel %vm251, %v700, 0.0
        %s704 = sld [smem:[#allocation7 + $0x1e]]
        %v705 = vstv %s704
        %v706 = vmul.f32 %v705, %v702
        %v707 = vmul.f32 %v705, %v703
        %v708 = vadd.f32 %v694, %v706
        %v709 = vadd.f32 %v695, %v707
        %s710 = sld [smem:[#allocation7 + $0x1f]]
        %v711 = vstv %s710
        %v712 = vmul.f32 %v711, %v666
        %v713 = vmul.f32 %v711, %v667
        %v714 = vadd.f32 %v708, %v712
        %v715 = vadd.f32 %v709, %v713
        %716 = vrot.lane.b32.xlu0 %v666, 127
        %v717 = vpop.permute.xlu0 %716
        %718 = vrot.lane.b32.xlu0 %v667, 127
        %v719 = vpop.permute.xlu0 %718
        %v720 = vsel %vm330, %v717, %v719
        %v721 = vsel %vm330, %v719, %v717
        %v722 = vsel %vm254, %v720, 0.0
        %v723 = vsel %vm255, %v721, 0.0
        %s724 = sld [smem:[#allocation7 + $0x20]]
        %v725 = vstv %s724
        %v726 = vmul.f32 %v725, %v722
        %v727 = vmul.f32 %v725, %v723
        %v728 = vadd.f32 %v714, %v726
        %v729 = vadd.f32 %v715, %v727
        %730 = vrot.lane.b32.xlu0 %v666, 126
        %v731 = vpop.permute.xlu0 %730
        %732 = vrot.lane.b32.xlu0 %v667, 126
        %v733 = vpop.permute.xlu0 %732
        %v734 = vsel %vm345, %v731, %v733
        %v735 = vsel %vm345, %v733, %v731
        %v736 = vsel %vm258, %v734, 0.0
        %v737 = vsel %vm259, %v735, 0.0
        %s738 = sld [smem:[#allocation7 + $0x21]]
        %v739 = vstv %s738
        %v740 = vmul.f32 %v739, %v736
        %v741 = vmul.f32 %v739, %v737
        %v742 = vadd.f32 %v728, %v740
        %v743 = vadd.f32 %v729, %v741
        %744 = vrot.lane.b32.xlu0 %v666, 125
        %v745 = vpop.permute.xlu0 %744
        %746 = vrot.lane.b32.xlu0 %v667, 125
        %v747 = vpop.permute.xlu0 %746
        %v748 = vsel %vm360, %v745, %v747
        %v749 = vsel %vm360, %v747, %v745
        %v750 = vsel %vm262, %v748, 0.0
        %v751 = vsel %vm263, %v749, 0.0
        %s752 = sld [smem:[#allocation7 + $0x22]]
        %v753 = vstv %s752
        %v754 = vmul.f32 %v753, %v750
        %v755 = vmul.f32 %v753, %v751
        %v756 = vadd.f32 %v742, %v754
        %v757 = vadd.f32 %v743, %v755
        %758 = vrot.lane.b32.xlu0 %v213, 96
        %v759 = vpop.permute.xlu0 %758
        %760 = vrot.lane.b32.xlu0 %v220, 96
        %v761 = vpop.permute.xlu0 %760
        %vm762 = vcmp.lt.s32.totalorder %v236, 96
        %v763 = vsel %vm762, %v759, %v761
        %v764 = vsel %vm762, %v761, %v759
        %v765 = vsel %vm256, %v763, 0.0
        %v766 = vsel %vm257, %v764, 0.0
        %767 = vrot.lane.b32.xlu0 %v765, 3
        %v768 = vpop.permute.xlu0 %767
        %769 = vrot.lane.b32.xlu0 %v766, 3
        %v770 = vpop.permute.xlu0 %769
        %v771 = vsel %vm279, %v768, %v770
        %v772 = vsel %vm279, %v770, %v768
        %v773 = vsel %vm242, %v772, 0.0
        %v774 = vsel %vm243, %v771, 0.0
        %s775 = sld [smem:[#allocation7 + $0x23]]
        %v776 = vstv %s775
        %v777 = vmul.f32 %v776, %v773
        %v778 = vmul.f32 %v776, %v774
        %v779 = vadd.f32 %v756, %v777
        %v780 = vadd.f32 %v757, %v778
        %781 = vrot.lane.b32.xlu0 %v765, 2
        %v782 = vpop.permute.xlu0 %781
        %783 = vrot.lane.b32.xlu0 %v766, 2
        %v784 = vpop.permute.xlu0 %783
        %v785 = vsel %vm294, %v782, %v784
        %v786 = vsel %vm294, %v784, %v782
        %v787 = vsel %vm246, %v786, 0.0
        %v788 = vsel %vm247, %v785, 0.0
        %s789 = sld [smem:[#allocation7 + $0x24]]
        %v790 = vstv %s789
        %v791 = vmul.f32 %v790, %v787
        %v792 = vmul.f32 %v790, %v788
        %v793 = vadd.f32 %v779, %v791
        %v794 = vadd.f32 %v780, %v792
        %795 = vrot.lane.b32.xlu0 %v765, 1
        %v796 = vpop.permute.xlu0 %795
        %797 = vrot.lane.b32.xlu0 %v766, 1
        %v798 = vpop.permute.xlu0 %797
        %v799 = vsel %vm309, %v796, %v798
        %v800 = vsel %vm309, %v798, %v796
        %v801 = vsel %vm250, %v800, 0.0
        %v802 = vsel %vm251, %v799, 0.0
        %s803 = sld [smem:[#allocation7 + $0x25]]
        %v804 = vstv %s803
        %v805 = vmul.f32 %v804, %v801
        %v806 = vmul.f32 %v804, %v802
        %v807 = vadd.f32 %v793, %v805
        %v808 = vadd.f32 %v794, %v806
        %s809 = sld [smem:[#allocation7 + $0x26]]
        %v810 = vstv %s809
        %v811 = vmul.f32 %v810, %v765
        %v812 = vmul.f32 %v810, %v766
        %v813 = vadd.f32 %v807, %v811
        %v814 = vadd.f32 %v808, %v812
        %815 = vrot.lane.b32.xlu0 %v765, 127
        %v816 = vpop.permute.xlu0 %815
        %817 = vrot.lane.b32.xlu0 %v766, 127
        %v818 = vpop.permute.xlu0 %817
        %v819 = vsel %vm330, %v816, %v818
        %v820 = vsel %vm330, %v818, %v816
        %v821 = vsel %vm254, %v819, 0.0
        %v822 = vsel %vm255, %v820, 0.0
        %s823 = sld [smem:[#allocation7 + $0x27]]
        %v824 = vstv %s823
        %v825 = vmul.f32 %v824, %v821
        %v826 = vmul.f32 %v824, %v822
        %v827 = vadd.f32 %v813, %v825
        %v828 = vadd.f32 %v814, %v826
        %829 = vrot.lane.b32.xlu0 %v765, 126
        %v830 = vpop.permute.xlu0 %829
        %831 = vrot.lane.b32.xlu0 %v766, 126
        %v832 = vpop.permute.xlu0 %831
        %v833 = vsel %vm345, %v830, %v832
        %v834 = vsel %vm345, %v832, %v830
        %v835 = vsel %vm258, %v833, 0.0
        %v836 = vsel %vm259, %v834, 0.0
        %s837 = sld [smem:[#allocation7 + $0x28]]
        %v838 = vstv %s837
        %v839 = vmul.f32 %v838, %v835
        %v840 = vmul.f32 %v838, %v836
        %v841 = vadd.f32 %v827, %v839
        %v842 = vadd.f32 %v828, %v840
        %843 = vrot.lane.b32.xlu0 %v765, 125
        %v844 = vpop.permute.xlu0 %843
        %845 = vrot.lane.b32.xlu0 %v766, 125
        %v846 = vpop.permute.xlu0 %845
        %v847 = vsel %vm360, %v844, %v846
        %v848 = vsel %vm360, %v846, %v844
        %v849 = vsel %vm262, %v847, 0.0
        %v850 = vsel %vm263, %v848, 0.0
        %s851 = sld [smem:[#allocation7 + $0x29]]
        %v852 = vstv %s851
        %v853 = vmul.f32 %v852, %v849
        %v854 = vmul.f32 %v852, %v850
        %v855 = vadd.f32 %v841, %v853
        %v856 = vadd.f32 %v842, %v854
        %857 = vrot.lane.b32.xlu0 %v213, 80
        %v858 = vpop.permute.xlu0 %857
        %859 = vrot.lane.b32.xlu0 %v220, 80
        %v860 = vpop.permute.xlu0 %859
        %vm861 = vcmp.lt.s32.totalorder %v236, 80
        %v862 = vsel %vm861, %v858, %v860
        %v863 = vsel %vm861, %v860, %v858
        %v864 = vsel %vm260, %v862, 0.0
        %v865 = vsel %vm261, %v863, 0.0
        %866 = vrot.lane.b32.xlu0 %v864, 3
        %v867 = vpop.permute.xlu0 %866
        %868 = vrot.lane.b32.xlu0 %v865, 3
        %v869 = vpop.permute.xlu0 %868
        %v870 = vsel %vm279, %v867, %v869
        %v871 = vsel %vm279, %v869, %v867
        %v872 = vsel %vm242, %v871, 0.0
        %v873 = vsel %vm243, %v870, 0.0
        %s874 = sld [smem:[#allocation7 + $0x2a]]
        %v875 = vstv %s874
        %v876 = vmul.f32 %v875, %v872
        %v877 = vmul.f32 %v875, %v873
        %v878 = vadd.f32 %v855, %v876
        %v879 = vadd.f32 %v856, %v877
        %880 = vrot.lane.b32.xlu0 %v864, 2
        %v881 = vpop.permute.xlu0 %880
        %882 = vrot.lane.b32.xlu0 %v865, 2
        %v883 = vpop.permute.xlu0 %882
        %v884 = vsel %vm294, %v881, %v883
        %v885 = vsel %vm294, %v883, %v881
        %v886 = vsel %vm246, %v885, 0.0
        %v887 = vsel %vm247, %v884, 0.0
        %s888 = sld [smem:[#allocation7 + $0x2b]]
        %v889 = vstv %s888
        %v890 = vmul.f32 %v889, %v886
        %v891 = vmul.f32 %v889, %v887
        %v892 = vadd.f32 %v878, %v890
        %v893 = vadd.f32 %v879, %v891
        %894 = vrot.lane.b32.xlu0 %v864, 1
        %v895 = vpop.permute.xlu0 %894
        %896 = vrot.lane.b32.xlu0 %v865, 1
        %v897 = vpop.permute.xlu0 %896
        %v898 = vsel %vm309, %v895, %v897
        %v899 = vsel %vm309, %v897, %v895
        %v900 = vsel %vm250, %v899, 0.0
        %v901 = vsel %vm251, %v898, 0.0
        %s902 = sld [smem:[#allocation7 + $0x2c]]
        %v903 = vstv %s902
        %v904 = vmul.f32 %v903, %v900
        %v905 = vmul.f32 %v903, %v901
        %v906 = vadd.f32 %v892, %v904
        %v907 = vadd.f32 %v893, %v905
        %s908 = sld [smem:[#allocation7 + $0x2d]]
        %v909 = vstv %s908
        %v910 = vmul.f32 %v909, %v864
        %v911 = vmul.f32 %v909, %v865
        %v912 = vadd.f32 %v906, %v910
        %v913 = vadd.f32 %v907, %v911
        %914 = vrot.lane.b32.xlu0 %v864, 127
        %v915 = vpop.permute.xlu0 %914
        %916 = vrot.lane.b32.xlu0 %v865, 127
        %v917 = vpop.permute.xlu0 %916
        %v918 = vsel %vm330, %v915, %v917
        %v919 = vsel %vm330, %v917, %v915
        %v920 = vsel %vm254, %v918, 0.0
        %v921 = vsel %vm255, %v919, 0.0
        %s922 = sld [smem:[#allocation7 + $0x2e]]
        %v923 = vstv %s922
        %v924 = vmul.f32 %v923, %v920
        %v925 = vmul.f32 %v923, %v921
        %v926 = vadd.f32 %v912, %v924
        %v927 = vadd.f32 %v913, %v925
        %928 = vrot.lane.b32.xlu0 %v864, 126
        %v929 = vpop.permute.xlu0 %928
        %930 = vrot.lane.b32.xlu0 %v865, 126
        %v931 = vpop.permute.xlu0 %930
        %v932 = vsel %vm345, %v929, %v931
        %v933 = vsel %vm345, %v931, %v929
        %v934 = vsel %vm258, %v932, 0.0
        %v935 = vsel %vm259, %v933, 0.0
        %s936 = sld [smem:[#allocation7 + $0x2f]]
        %v937 = vstv %s936
        %v938 = vmul.f32 %v937, %v934
        %v939 = vmul.f32 %v937, %v935
        %v940 = vadd.f32 %v926, %v938
        %v941 = vadd.f32 %v927, %v939
        %942 = vrot.lane.b32.xlu0 %v864, 125
        %v943 = vpop.permute.xlu0 %942
        %944 = vrot.lane.b32.xlu0 %v865, 125
        %v945 = vpop.permute.xlu0 %944
        %v946 = vsel %vm360, %v943, %v945
        %v947 = vsel %vm360, %v945, %v943
        %v948 = vsel %vm262, %v946, 0.0
        %v949 = vsel %vm263, %v947, 0.0
        %s950 = sld [smem:[#allocation7 + $0x30]]
        %v951 = vstv %s950
        %v952 = vmul.f32 %v951, %v948
        %v953 = vmul.f32 %v951, %v949
        %v954 = vadd.f32 %v940, %v952
        %v955 = vadd.f32 %v941, %v953
        %956 = vrot.lane.b32.xlu0 %v227, 48
        %v957 = vpop.permute.xlu0 %956
        %958 = vrot.lane.b32.xlu0 %v234, 48
        %v959 = vpop.permute.xlu0 %958
        %v960 = vsel %vm270, %v957, %v959
        %v961 = vsel %vm270, %v959, %v957
        %v962 = vsel %vm240, %v961, 0.0
        %v963 = vsel %vm241, %v960, 0.0
        %964 = vrot.lane.b32.xlu0 %v962, 3
        %v965 = vpop.permute.xlu0 %964
        %966 = vrot.lane.b32.xlu0 %v963, 3
        %v967 = vpop.permute.xlu0 %966
        %v968 = vsel %vm279, %v965, %v967
        %v969 = vsel %vm279, %v967, %v965
        %v970 = vsel %vm242, %v969, 0.0
        %v971 = vsel %vm243, %v968, 0.0
        %s972 = sld [smem:[#allocation7 + $0x31]]
        %v973 = vstv %s972
        %v974 = vmul.f32 %v973, %v970
        %v975 = vmul.f32 %v973, %v971
        %v976 = vadd.f32 %v954, %v974
        %v977 = vadd.f32 %v955, %v975
        %978 = vrot.lane.b32.xlu0 %v962, 2
        %v979 = vpop.permute.xlu0 %978
        %980 = vrot.lane.b32.xlu0 %v963, 2
        %v981 = vpop.permute.xlu0 %980
        %v982 = vsel %vm294, %v979, %v981
        %v983 = vsel %vm294, %v981, %v979
        %v984 = vsel %vm246, %v983, 0.0
        %v985 = vsel %vm247, %v982, 0.0
        %s986 = sld [smem:[#allocation7 + $0x32]]
        %v987 = vstv %s986
        %v988 = vmul.f32 %v987, %v984
        %v989 = vmul.f32 %v987, %v985
        %v990 = vadd.f32 %v976, %v988
        %v991 = vadd.f32 %v977, %v989
        %992 = vrot.lane.b32.xlu0 %v962, 1
        %v993 = vpop.permute.xlu0 %992
        %994 = vrot.lane.b32.xlu0 %v963, 1
        %v995 = vpop.permute.xlu0 %994
        %v996 = vsel %vm309, %v993, %v995
        %v997 = vsel %vm309, %v995, %v993
        %v998 = vsel %vm250, %v997, 0.0
        %v999 = vsel %vm251, %v996, 0.0
        %s1000 = sld [smem:[#allocation7 + $0x33]]
        %v1001 = vstv %s1000
        %v1002 = vmul.f32 %v1001, %v998
        %v1003 = vmul.f32 %v1001, %v999
        %v1004 = vadd.f32 %v990, %v1002
        %v1005 = vadd.f32 %v991, %v1003
        %s1006 = sld [smem:[#allocation7 + $0x34]]
        %v1007 = vstv %s1006
        %v1008 = vmul.f32 %v1007, %v962
        %v1009 = vmul.f32 %v1007, %v963
        %v1010 = vadd.f32 %v1004, %v1008
        %v1011 = vadd.f32 %v1005, %v1009
        %1012 = vrot.lane.b32.xlu0 %v962, 127
        %v1013 = vpop.permute.xlu0 %1012
        %1014 = vrot.lane.b32.xlu0 %v963, 127
        %v1015 = vpop.permute.xlu0 %1014
        %v1016 = vsel %vm330, %v1013, %v1015
        %v1017 = vsel %vm330, %v1015, %v1013
        %v1018 = vsel %vm254, %v1016, 0.0
        %v1019 = vsel %vm255, %v1017, 0.0
        %s1020 = sld [smem:[#allocation7 + $0x35]]
        %v1021 = vstv %s1020
        %v1022 = vmul.f32 %v1021, %v1018
        %v1023 = vmul.f32 %v1021, %v1019
        %v1024 = vadd.f32 %v1010, %v1022
        %v1025 = vadd.f32 %v1011, %v1023
        %1026 = vrot.lane.b32.xlu0 %v962, 126
        %v1027 = vpop.permute.xlu0 %1026
        %1028 = vrot.lane.b32.xlu0 %v963, 126
        %v1029 = vpop.permute.xlu0 %1028
        %v1030 = vsel %vm345, %v1027, %v1029
        %v1031 = vsel %vm345, %v1029, %v1027
        %v1032 = vsel %vm258, %v1030, 0.0
        %v1033 = vsel %vm259, %v1031, 0.0
        %s1034 = sld [smem:[#allocation7 + $0x36]]
        %v1035 = vstv %s1034
        %v1036 = vmul.f32 %v1035, %v1032
        %v1037 = vmul.f32 %v1035, %v1033
        %v1038 = vadd.f32 %v1024, %v1036
        %v1039 = vadd.f32 %v1025, %v1037
        %1040 = vrot.lane.b32.xlu0 %v962, 125
        %v1041 = vpop.permute.xlu0 %1040
        %1042 = vrot.lane.b32.xlu0 %v963, 125
        %v1043 = vpop.permute.xlu0 %1042
        %v1044 = vsel %vm360, %v1041, %v1043
        %v1045 = vsel %vm360, %v1043, %v1041
        %v1046 = vsel %vm262, %v1044, 0.0
        %v1047 = vsel %vm263, %v1045, 0.0
        %s1048 = sld [smem:[#allocation7 + $0x37]]
        %v1049 = vstv %s1048
        %v1050 = vmul.f32 %v1049, %v1046
        %v1051 = vmul.f32 %v1049, %v1047
        %v1052 = vadd.f32 %v1038, %v1050
        %v1053 = vadd.f32 %v1039, %v1051
        %1054 = vrot.lane.b32.xlu0 %v227, 32
        %v1055 = vpop.permute.xlu0 %1054
        %1056 = vrot.lane.b32.xlu0 %v234, 32
        %v1057 = vpop.permute.xlu0 %1056
        %v1058 = vsel %vm375, %v1055, %v1057
        %v1059 = vsel %vm375, %v1057, %v1055
        %v1060 = vsel %vm244, %v1059, 0.0
        %v1061 = vsel %vm245, %v1058, 0.0
        %1062 = vrot.lane.b32.xlu0 %v1060, 3
        %v1063 = vpop.permute.xlu0 %1062
        %1064 = vrot.lane.b32.xlu0 %v1061, 3
        %v1065 = vpop.permute.xlu0 %1064
        %v1066 = vsel %vm279, %v1063, %v1065
        %v1067 = vsel %vm279, %v1065, %v1063
        %v1068 = vsel %vm242, %v1067, 0.0
        %v1069 = vsel %vm243, %v1066, 0.0
        %s1070 = sld [smem:[#allocation7 + $0x38]]
        %v1071 = vstv %s1070
        %v1072 = vmul.f32 %v1071, %v1068
        %v1073 = vmul.f32 %v1071, %v1069
        %v1074 = vadd.f32 %v1052, %v1072
        %v1075 = vadd.f32 %v1053, %v1073
        %1076 = vrot.lane.b32.xlu0 %v1060, 2
        %v1077 = vpop.permute.xlu0 %1076
        %1078 = vrot.lane.b32.xlu0 %v1061, 2
        %v1079 = vpop.permute.xlu0 %1078
        %v1080 = vsel %vm294, %v1077, %v1079
        %v1081 = vsel %vm294, %v1079, %v1077
        %v1082 = vsel %vm246, %v1081, 0.0
        %v1083 = vsel %vm247, %v1080, 0.0
        %s1084 = sld [smem:[#allocation7 + $0x39]]
        %v1085 = vstv %s1084
        %v1086 = vmul.f32 %v1085, %v1082
        %v1087 = vmul.f32 %v1085, %v1083
        %v1088 = vadd.f32 %v1074, %v1086
        %v1089 = vadd.f32 %v1075, %v1087
        %1090 = vrot.lane.b32.xlu0 %v1060, 1
        %v1091 = vpop.permute.xlu0 %1090
        %1092 = vrot.lane.b32.xlu0 %v1061, 1
        %v1093 = vpop.permute.xlu0 %1092
        %v1094 = vsel %vm309, %v1091, %v1093
        %v1095 = vsel %vm309, %v1093, %v1091
        %v1096 = vsel %vm250, %v1095, 0.0
        %v1097 = vsel %vm251, %v1094, 0.0
        %s1098 = sld [smem:[#allocation7 + $0x3a]]
        %v1099 = vstv %s1098
        %v1100 = vmul.f32 %v1099, %v1096
        %v1101 = vmul.f32 %v1099, %v1097
        %v1102 = vadd.f32 %v1088, %v1100
        %v1103 = vadd.f32 %v1089, %v1101
        %s1104 = sld [smem:[#allocation7 + $0x3b]]
        %v1105 = vstv %s1104
        %v1106 = vmul.f32 %v1105, %v1060
        %v1107 = vmul.f32 %v1105, %v1061
        %v1108 = vadd.f32 %v1102, %v1106
        %v1109 = vadd.f32 %v1103, %v1107
        %1110 = vrot.lane.b32.xlu0 %v1060, 127
        %v1111 = vpop.permute.xlu0 %1110
        %1112 = vrot.lane.b32.xlu0 %v1061, 127
        %v1113 = vpop.permute.xlu0 %1112
        %v1114 = vsel %vm330, %v1111, %v1113
        %v1115 = vsel %vm330, %v1113, %v1111
        %v1116 = vsel %vm254, %v1114, 0.0
        %v1117 = vsel %vm255, %v1115, 0.0
        %s1118 = sld [smem:[#allocation7 + $0x3c]]
        %v1119 = vstv %s1118
        %v1120 = vmul.f32 %v1119, %v1116
        %v1121 = vmul.f32 %v1119, %v1117
        %v1122 = vadd.f32 %v1108, %v1120
        %v1123 = vadd.f32 %v1109, %v1121
        %1124 = vrot.lane.b32.xlu0 %v1060, 126
        %v1125 = vpop.permute.xlu0 %1124
        %1126 = vrot.lane.b32.xlu0 %v1061, 126
        %v1127 = vpop.permute.xlu0 %1126
        %v1128 = vsel %vm345, %v1125, %v1127
        %v1129 = vsel %vm345, %v1127, %v1125
        %v1130 = vsel %vm258, %v1128, 0.0
        %v1131 = vsel %vm259, %v1129, 0.0
        %s1132 = sld [smem:[#allocation7 + $0x3d]]
        %v1133 = vstv %s1132
        %v1134 = vmul.f32 %v1133, %v1130
        %v1135 = vmul.f32 %v1133, %v1131
        %v1136 = vadd.f32 %v1122, %v1134
        %v1137 = vadd.f32 %v1123, %v1135
        %1138 = vrot.lane.b32.xlu0 %v1060, 125
        %v1139 = vpop.permute.xlu0 %1138
        %1140 = vrot.lane.b32.xlu0 %v1061, 125
        %v1141 = vpop.permute.xlu0 %1140
        %v1142 = vsel %vm360, %v1139, %v1141
        %v1143 = vsel %vm360, %v1141, %v1139
        %v1144 = vsel %vm262, %v1142, 0.0
        %v1145 = vsel %vm263, %v1143, 0.0
        %s1146 = sld [smem:[#allocation7 + $0x3e]]
        %v1147 = vstv %s1146
        %v1148 = vmul.f32 %v1147, %v1144
        %v1149 = vmul.f32 %v1147, %v1145
        %v1150 = vadd.f32 %v1136, %v1148
        %v1151 = vadd.f32 %v1137, %v1149
        %1152 = vrot.lane.b32.xlu0 %v227, 16
        %v1153 = vpop.permute.xlu0 %1152
        %1154 = vrot.lane.b32.xlu0 %v234, 16
        %v1155 = vpop.permute.xlu0 %1154
        %v1156 = vsel %vm474, %v1153, %v1155
        %v1157 = vsel %vm474, %v1155, %v1153
        %v1158 = vsel %vm248, %v1157, 0.0
        %v1159 = vsel %vm249, %v1156, 0.0
        %1160 = vrot.lane.b32.xlu0 %v1158, 3
        %v1161 = vpop.permute.xlu0 %1160
        %1162 = vrot.lane.b32.xlu0 %v1159, 3
        %v1163 = vpop.permute.xlu0 %1162
        %v1164 = vsel %vm279, %v1161, %v1163
        %v1165 = vsel %vm279, %v1163, %v1161
        %v1166 = vsel %vm242, %v1165, 0.0
        %v1167 = vsel %vm243, %v1164, 0.0
        %s1168 = sld [smem:[#allocation7 + $0x3f]]
        %v1169 = vstv %s1168
        %v1170 = vmul.f32 %v1169, %v1166
        %v1171 = vmul.f32 %v1169, %v1167
        %v1172 = vadd.f32 %v1150, %v1170
        %v1173 = vadd.f32 %v1151, %v1171
        %1174 = vrot.lane.b32.xlu0 %v1158, 2
        %v1175 = vpop.permute.xlu0 %1174
        %1176 = vrot.lane.b32.xlu0 %v1159, 2
        %v1177 = vpop.permute.xlu0 %1176
        %v1178 = vsel %vm294, %v1175, %v1177
        %v1179 = vsel %vm294, %v1177, %v1175
        %v1180 = vsel %vm246, %v1179, 0.0
        %v1181 = vsel %vm247, %v1178, 0.0
        %s1182 = sld [smem:[#allocation7 + $0x40]]
        %v1183 = vstv %s1182
        %v1184 = vmul.f32 %v1183, %v1180
        %v1185 = vmul.f32 %v1183, %v1181
        %v1186 = vadd.f32 %v1172, %v1184
        %v1187 = vadd.f32 %v1173, %v1185
        %1188 = vrot.lane.b32.xlu0 %v1158, 1
        %v1189 = vpop.permute.xlu0 %1188
        %1190 = vrot.lane.b32.xlu0 %v1159, 1
        %v1191 = vpop.permute.xlu0 %1190
        %v1192 = vsel %vm309, %v1189, %v1191
        %v1193 = vsel %vm309, %v1191, %v1189
        %v1194 = vsel %vm250, %v1193, 0.0
        %v1195 = vsel %vm251, %v1192, 0.0
        %s1196 = sld [smem:[#allocation7 + $0x41]]
        %v1197 = vstv %s1196
        %v1198 = vmul.f32 %v1197, %v1194
        %v1199 = vmul.f32 %v1197, %v1195
        %v1200 = vadd.f32 %v1186, %v1198
        %v1201 = vadd.f32 %v1187, %v1199
        %s1202 = sld [smem:[#allocation7 + $0x42]]
        %v1203 = vstv %s1202
        %v1204 = vmul.f32 %v1203, %v1158
        %v1205 = vmul.f32 %v1203, %v1159
        %v1206 = vadd.f32 %v1200, %v1204
        %v1207 = vadd.f32 %v1201, %v1205
        %1208 = vrot.lane.b32.xlu0 %v1158, 127
        %v1209 = vpop.permute.xlu0 %1208
        %1210 = vrot.lane.b32.xlu0 %v1159, 127
        %v1211 = vpop.permute.xlu0 %1210
        %v1212 = vsel %vm330, %v1209, %v1211
        %v1213 = vsel %vm330, %v1211, %v1209
        %v1214 = vsel %vm254, %v1212, 0.0
        %v1215 = vsel %vm255, %v1213, 0.0
        %s1216 = sld [smem:[#allocation7 + $0x43]]
        %v1217 = vstv %s1216
        %v1218 = vmul.f32 %v1217, %v1214
        %v1219 = vmul.f32 %v1217, %v1215
        %v1220 = vadd.f32 %v1206, %v1218
        %v1221 = vadd.f32 %v1207, %v1219
        %1222 = vrot.lane.b32.xlu0 %v1158, 126
        %v1223 = vpop.permute.xlu0 %1222
        %1224 = vrot.lane.b32.xlu0 %v1159, 126
        %v1225 = vpop.permute.xlu0 %1224
        %v1226 = vsel %vm345, %v1223, %v1225
        %v1227 = vsel %vm345, %v1225, %v1223
        %v1228 = vsel %vm258, %v1226, 0.0
        %v1229 = vsel %vm259, %v1227, 0.0
        %s1230 = sld [smem:[#allocation7 + $0x44]]
        %v1231 = vstv %s1230
        %v1232 = vmul.f32 %v1231, %v1228
        %v1233 = vmul.f32 %v1231, %v1229
        %v1234 = vadd.f32 %v1220, %v1232
        %v1235 = vadd.f32 %v1221, %v1233
        %1236 = vrot.lane.b32.xlu0 %v1158, 125
        %v1237 = vpop.permute.xlu0 %1236
        %1238 = vrot.lane.b32.xlu0 %v1159, 125
        %v1239 = vpop.permute.xlu0 %1238
        %v1240 = vsel %vm360, %v1237, %v1239
        %v1241 = vsel %vm360, %v1239, %v1237
        %v1242 = vsel %vm262, %v1240, 0.0
        %v1243 = vsel %vm263, %v1241, 0.0
        %s1244 = sld [smem:[#allocation7 + $0x45]]
        %v1245 = vstv %s1244
        %v1246 = vmul.f32 %v1245, %v1242
        %v1247 = vmul.f32 %v1245, %v1243
        %v1248 = vadd.f32 %v1234, %v1246
        %v1249 = vadd.f32 %v1235, %v1247
        %1250 = vrot.lane.b32.xlu0 %v227, 3
        %v1251 = vpop.permute.xlu0 %1250
        %1252 = vrot.lane.b32.xlu0 %v234, 3
        %v1253 = vpop.permute.xlu0 %1252
        %v1254 = vsel %vm279, %v1251, %v1253
        %v1255 = vsel %vm279, %v1253, %v1251
        %v1256 = vsel %vm242, %v1255, 0.0
        %v1257 = vsel %vm243, %v1254, 0.0
        %s1258 = sld [smem:[#allocation7 + $0x46]]
        %v1259 = vstv %s1258
        %v1260 = vmul.f32 %v1259, %v1256
        %v1261 = vmul.f32 %v1259, %v1257
        %v1262 = vadd.f32 %v1248, %v1260
        %v1263 = vadd.f32 %v1249, %v1261
        %1264 = vrot.lane.b32.xlu0 %v227, 2
        %v1265 = vpop.permute.xlu0 %1264
        %1266 = vrot.lane.b32.xlu0 %v234, 2
        %v1267 = vpop.permute.xlu0 %1266
        %v1268 = vsel %vm294, %v1265, %v1267
        %v1269 = vsel %vm294, %v1267, %v1265
        %v1270 = vsel %vm246, %v1269, 0.0
        %v1271 = vsel %vm247, %v1268, 0.0
        %s1272 = sld [smem:[#allocation7 + $0x47]]
        %v1273 = vstv %s1272
        %v1274 = vmul.f32 %v1273, %v1270
        %v1275 = vmul.f32 %v1273, %v1271
        %v1276 = vadd.f32 %v1262, %v1274
        %v1277 = vadd.f32 %v1263, %v1275
        %1278 = vrot.lane.b32.xlu0 %v227, 1
        %v1279 = vpop.permute.xlu0 %1278
        %1280 = vrot.lane.b32.xlu0 %v234, 1
        %v1281 = vpop.permute.xlu0 %1280
        %v1282 = vsel %vm309, %v1279, %v1281
        %v1283 = vsel %vm309, %v1281, %v1279
        %v1284 = vsel %vm250, %v1283, 0.0
        %v1285 = vsel %vm251, %v1282, 0.0
        %s1286 = sld [smem:[#allocation7 + $0x48]]
        %v1287 = vstv %s1286
        %v1288 = vmul.f32 %v1287, %v1284
        %v1289 = vmul.f32 %v1287, %v1285
        %v1290 = vadd.f32 %v1276, %v1288
        %v1291 = vadd.f32 %v1277, %v1289
        %s1292 = sld [smem:[#allocation7 + $0x49]]
        %v1293 = vstv %s1292
        %v1294 = vmul.f32 %v1293, %v227
        %v1295 = vmul.f32 %v1293, %v234
        %v1296 = vadd.f32 %v1290, %v1294
        %v1297 = vadd.f32 %v1291, %v1295
        %1298 = vrot.lane.b32.xlu0 %v227, 127
        %v1299 = vpop.permute.xlu0 %1298
        %1300 = vrot.lane.b32.xlu0 %v234, 127
        %v1301 = vpop.permute.xlu0 %1300
        %v1302 = vsel %vm330, %v1299, %v1301
        %v1303 = vsel %vm330, %v1301, %v1299
        %v1304 = vsel %vm254, %v1302, 0.0
        %v1305 = vsel %vm255, %v1303, 0.0
        %s1306 = sld [smem:[#allocation7 + $0x4a]]
        %v1307 = vstv %s1306
        %v1308 = vmul.f32 %v1307, %v1304
        %v1309 = vmul.f32 %v1307, %v1305
        %v1310 = vadd.f32 %v1296, %v1308
        %v1311 = vadd.f32 %v1297, %v1309
        %1312 = vrot.lane.b32.xlu0 %v227, 126
        %v1313 = vpop.permute.xlu0 %1312
        %1314 = vrot.lane.b32.xlu0 %v234, 126
        %v1315 = vpop.permute.xlu0 %1314
        %v1316 = vsel %vm345, %v1313, %v1315
        %v1317 = vsel %vm345, %v1315, %v1313
        %v1318 = vsel %vm258, %v1316, 0.0
        %v1319 = vsel %vm259, %v1317, 0.0
        %s1320 = sld [smem:[#allocation7 + $0x4b]]
        %v1321 = vstv %s1320
        %v1322 = vmul.f32 %v1321, %v1318
        %v1323 = vmul.f32 %v1321, %v1319
        %v1324 = vadd.f32 %v1310, %v1322
        %v1325 = vadd.f32 %v1311, %v1323
        %1326 = vrot.lane.b32.xlu0 %v227, 125
        %v1327 = vpop.permute.xlu0 %1326
        %1328 = vrot.lane.b32.xlu0 %v234, 125
        %v1329 = vpop.permute.xlu0 %1328
        %v1330 = vsel %vm360, %v1327, %v1329
        %v1331 = vsel %vm360, %v1329, %v1327
        %v1332 = vsel %vm262, %v1330, 0.0
        %v1333 = vsel %vm263, %v1331, 0.0
        %s1334 = sld [smem:[#allocation7 + $0x4c]]
        %v1335 = vstv %s1334
        %v1336 = vmul.f32 %v1335, %v1332
        %v1337 = vmul.f32 %v1335, %v1333
        %v1338 = vadd.f32 %v1324, %v1336
        %v1339 = vadd.f32 %v1325, %v1337
        %1340 = vrot.lane.b32.xlu0 %v227, 112
        %v1341 = vpop.permute.xlu0 %1340
        %1342 = vrot.lane.b32.xlu0 %v234, 112
        %v1343 = vpop.permute.xlu0 %1342
        %v1344 = vsel %vm663, %v1341, %v1343
        %v1345 = vsel %vm663, %v1343, %v1341
        %v1346 = vsel %vm252, %v1344, 0.0
        %v1347 = vsel %vm253, %v1345, 0.0
        %1348 = vrot.lane.b32.xlu0 %v1346, 3
        %v1349 = vpop.permute.xlu0 %1348
        %1350 = vrot.lane.b32.xlu0 %v1347, 3
        %v1351 = vpop.permute.xlu0 %1350
        %v1352 = vsel %vm279, %v1349, %v1351
        %v1353 = vsel %vm279, %v1351, %v1349
        %v1354 = vsel %vm242, %v1353, 0.0
        %v1355 = vsel %vm243, %v1352, 0.0
        %s1356 = sld [smem:[#allocation7 + $0x4d]]
        %v1357 = vstv %s1356
        %v1358 = vmul.f32 %v1357, %v1354
        %v1359 = vmul.f32 %v1357, %v1355
        %v1360 = vadd.f32 %v1338, %v1358
        %v1361 = vadd.f32 %v1339, %v1359
        %1362 = vrot.lane.b32.xlu0 %v1346, 2
        %v1363 = vpop.permute.xlu0 %1362
        %1364 = vrot.lane.b32.xlu0 %v1347, 2
        %v1365 = vpop.permute.xlu0 %1364
        %v1366 = vsel %vm294, %v1363, %v1365
        %v1367 = vsel %vm294, %v1365, %v1363
        %v1368 = vsel %vm246, %v1367, 0.0
        %v1369 = vsel %vm247, %v1366, 0.0
        %s1370 = sld [smem:[#allocation7 + $0x4e]]
        %v1371 = vstv %s1370
        %v1372 = vmul.f32 %v1371, %v1368
        %v1373 = vmul.f32 %v1371, %v1369
        %v1374 = vadd.f32 %v1360, %v1372
        %v1375 = vadd.f32 %v1361, %v1373
        %1376 = vrot.lane.b32.xlu0 %v1346, 1
        %v1377 = vpop.permute.xlu0 %1376
        %1378 = vrot.lane.b32.xlu0 %v1347, 1
        %v1379 = vpop.permute.xlu0 %1378
        %v1380 = vsel %vm309, %v1377, %v1379
        %v1381 = vsel %vm309, %v1379, %v1377
        %v1382 = vsel %vm250, %v1381, 0.0
        %v1383 = vsel %vm251, %v1380, 0.0
        %s1384 = sld [smem:[#allocation7 + $0x4f]]
        %v1385 = vstv %s1384
        %v1386 = vmul.f32 %v1385, %v1382
        %v1387 = vmul.f32 %v1385, %v1383
        %v1388 = vadd.f32 %v1374, %v1386
        %v1389 = vadd.f32 %v1375, %v1387
        %s1390 = sld [smem:[#allocation7 + $0x50]]
        %v1391 = vstv %s1390
        %v1392 = vmul.f32 %v1391, %v1346
        %v1393 = vmul.f32 %v1391, %v1347
        %v1394 = vadd.f32 %v1388, %v1392
        %v1395 = vadd.f32 %v1389, %v1393
        %1396 = vrot.lane.b32.xlu0 %v1346, 127
        %v1397 = vpop.permute.xlu0 %1396
        %1398 = vrot.lane.b32.xlu0 %v1347, 127
        %v1399 = vpop.permute.xlu0 %1398
        %v1400 = vsel %vm330, %v1397, %v1399
        %v1401 = vsel %vm330, %v1399, %v1397
        %v1402 = vsel %vm254, %v1400, 0.0
        %v1403 = vsel %vm255, %v1401, 0.0
        %s1404 = sld [smem:[#allocation7 + $0x51]]
        %v1405 = vstv %s1404
        %v1406 = vmul.f32 %v1405, %v1402
        %v1407 = vmul.f32 %v1405, %v1403
        %v1408 = vadd.f32 %v1394, %v1406
        %v1409 = vadd.f32 %v1395, %v1407
        %1410 = vrot.lane.b32.xlu0 %v1346, 126
        %v1411 = vpop.permute.xlu0 %1410
        %1412 = vrot.lane.b32.xlu0 %v1347, 126
        %v1413 = vpop.permute.xlu0 %1412
        %v1414 = vsel %vm345, %v1411, %v1413
        %v1415 = vsel %vm345, %v1413, %v1411
        %v1416 = vsel %vm258, %v1414, 0.0
        %v1417 = vsel %vm259, %v1415, 0.0
        %s1418 = sld [smem:[#allocation7 + $0x52]]
        %v1419 = vstv %s1418
        %v1420 = vmul.f32 %v1419, %v1416
        %v1421 = vmul.f32 %v1419, %v1417
        %v1422 = vadd.f32 %v1408, %v1420
        %v1423 = vadd.f32 %v1409, %v1421
        %1424 = vrot.lane.b32.xlu0 %v1346, 125
        %v1425 = vpop.permute.xlu0 %1424
        %1426 = vrot.lane.b32.xlu0 %v1347, 125
        %v1427 = vpop.permute.xlu0 %1426
        %v1428 = vsel %vm360, %v1425, %v1427
        %v1429 = vsel %vm360, %v1427, %v1425
        %v1430 = vsel %vm262, %v1428, 0.0
        %v1431 = vsel %vm263, %v1429, 0.0
        %s1432 = sld [smem:[#allocation7 + $0x53]]
        %v1433 = vstv %s1432
        %v1434 = vmul.f32 %v1433, %v1430
        %v1435 = vmul.f32 %v1433, %v1431
        %v1436 = vadd.f32 %v1422, %v1434
        %v1437 = vadd.f32 %v1423, %v1435
        %1438 = vrot.lane.b32.xlu0 %v227, 96
        %v1439 = vpop.permute.xlu0 %1438
        %1440 = vrot.lane.b32.xlu0 %v234, 96
        %v1441 = vpop.permute.xlu0 %1440
        %v1442 = vsel %vm762, %v1439, %v1441
        %v1443 = vsel %vm762, %v1441, %v1439
        %v1444 = vsel %vm256, %v1442, 0.0
        %v1445 = vsel %vm257, %v1443, 0.0
        %1446 = vrot.lane.b32.xlu0 %v1444, 3
        %v1447 = vpop.permute.xlu0 %1446
        %1448 = vrot.lane.b32.xlu0 %v1445, 3
        %v1449 = vpop.permute.xlu0 %1448
        %v1450 = vsel %vm279, %v1447, %v1449
        %v1451 = vsel %vm279, %v1449, %v1447
        %v1452 = vsel %vm242, %v1451, 0.0
        %v1453 = vsel %vm243, %v1450, 0.0
        %s1454 = sld [smem:[#allocation7 + $0x54]]
        %v1455 = vstv %s1454
        %v1456 = vmul.f32 %v1455, %v1452
        %v1457 = vmul.f32 %v1455, %v1453
        %v1458 = vadd.f32 %v1436, %v1456
        %v1459 = vadd.f32 %v1437, %v1457
        %1460 = vrot.lane.b32.xlu0 %v1444, 2
        %v1461 = vpop.permute.xlu0 %1460
        %1462 = vrot.lane.b32.xlu0 %v1445, 2
        %v1463 = vpop.permute.xlu0 %1462
        %v1464 = vsel %vm294, %v1461, %v1463
        %v1465 = vsel %vm294, %v1463, %v1461
        %v1466 = vsel %vm246, %v1465, 0.0
        %v1467 = vsel %vm247, %v1464, 0.0
        %s1468 = sld [smem:[#allocation7 + $0x55]]
        %v1469 = vstv %s1468
        %v1470 = vmul.f32 %v1469, %v1466
        %v1471 = vmul.f32 %v1469, %v1467
        %v1472 = vadd.f32 %v1458, %v1470
        %v1473 = vadd.f32 %v1459, %v1471
        %1474 = vrot.lane.b32.xlu0 %v1444, 1
        %v1475 = vpop.permute.xlu0 %1474
        %1476 = vrot.lane.b32.xlu0 %v1445, 1
        %v1477 = vpop.permute.xlu0 %1476
        %v1478 = vsel %vm309, %v1475, %v1477
        %v1479 = vsel %vm309, %v1477, %v1475
        %v1480 = vsel %vm250, %v1479, 0.0
        %v1481 = vsel %vm251, %v1478, 0.0
        %s1482 = sld [smem:[#allocation7 + $0x56]]
        %v1483 = vstv %s1482
        %v1484 = vmul.f32 %v1483, %v1480
        %v1485 = vmul.f32 %v1483, %v1481
        %v1486 = vadd.f32 %v1472, %v1484
        %v1487 = vadd.f32 %v1473, %v1485
        %s1488 = sld [smem:[#allocation7 + $0x57]]
        %v1489 = vstv %s1488
        %v1490 = vmul.f32 %v1489, %v1444
        %v1491 = vmul.f32 %v1489, %v1445
        %v1492 = vadd.f32 %v1486, %v1490
        %v1493 = vadd.f32 %v1487, %v1491
        %1494 = vrot.lane.b32.xlu0 %v1444, 127
        %v1495 = vpop.permute.xlu0 %1494
        %1496 = vrot.lane.b32.xlu0 %v1445, 127
        %v1497 = vpop.permute.xlu0 %1496
        %v1498 = vsel %vm330, %v1495, %v1497
        %v1499 = vsel %vm330, %v1497, %v1495
        %v1500 = vsel %vm254, %v1498, 0.0
        %v1501 = vsel %vm255, %v1499, 0.0
        %s1502 = sld [smem:[#allocation7 + $0x58]]
        %v1503 = vstv %s1502
        %v1504 = vmul.f32 %v1503, %v1500
        %v1505 = vmul.f32 %v1503, %v1501
        %v1506 = vadd.f32 %v1492, %v1504
        %v1507 = vadd.f32 %v1493, %v1505
        %1508 = vrot.lane.b32.xlu0 %v1444, 126
        %v1509 = vpop.permute.xlu0 %1508
        %1510 = vrot.lane.b32.xlu0 %v1445, 126
        %v1511 = vpop.permute.xlu0 %1510
        %v1512 = vsel %vm345, %v1509, %v1511
        %v1513 = vsel %vm345, %v1511, %v1509
        %v1514 = vsel %vm258, %v1512, 0.0
        %v1515 = vsel %vm259, %v1513, 0.0
        %s1516 = sld [smem:[#allocation7 + $0x59]]
        %v1517 = vstv %s1516
        %v1518 = vmul.f32 %v1517, %v1514
        %v1519 = vmul.f32 %v1517, %v1515
        %v1520 = vadd.f32 %v1506, %v1518
        %v1521 = vadd.f32 %v1507, %v1519
        %1522 = vrot.lane.b32.xlu0 %v1444, 125
        %v1523 = vpop.permute.xlu0 %1522
        %1524 = vrot.lane.b32.xlu0 %v1445, 125
        %v1525 = vpop.permute.xlu0 %1524
        %v1526 = vsel %vm360, %v1523, %v1525
        %v1527 = vsel %vm360, %v1525, %v1523
        %v1528 = vsel %vm262, %v1526, 0.0
        %v1529 = vsel %vm263, %v1527, 0.0
        %s1530 = sld [smem:[#allocation7 + $0x5a]]
        %v1531 = vstv %s1530
        %v1532 = vmul.f32 %v1531, %v1528
        %v1533 = vmul.f32 %v1531, %v1529
        %v1534 = vadd.f32 %v1520, %v1532
        %v1535 = vadd.f32 %v1521, %v1533
        %1536 = vrot.lane.b32.xlu0 %v227, 80
        %v1537 = vpop.permute.xlu0 %1536
        %1538 = vrot.lane.b32.xlu0 %v234, 80
        %v1539 = vpop.permute.xlu0 %1538
        %v1540 = vsel %vm861, %v1537, %v1539
        %v1541 = vsel %vm861, %v1539, %v1537
        %v1542 = vsel %vm260, %v1540, 0.0
        %v1543 = vsel %vm261, %v1541, 0.0
        %1544 = vrot.lane.b32.xlu0 %v1542, 3
        %v1545 = vpop.permute.xlu0 %1544
        %1546 = vrot.lane.b32.xlu0 %v1543, 3
        %v1547 = vpop.permute.xlu0 %1546
        %v1548 = vsel %vm279, %v1545, %v1547
        %v1549 = vsel %vm279, %v1547, %v1545
        %v1550 = vsel %vm242, %v1549, 0.0
        %v1551 = vsel %vm243, %v1548, 0.0
        %s1552 = sld [smem:[#allocation7 + $0x5b]]
        %v1553 = vstv %s1552
        %v1554 = vmul.f32 %v1553, %v1550
        %v1555 = vmul.f32 %v1553, %v1551
        %v1556 = vadd.f32 %v1534, %v1554
        %v1557 = vadd.f32 %v1535, %v1555
        %1558 = vrot.lane.b32.xlu0 %v1542, 2
        %v1559 = vpop.permute.xlu0 %1558
        %1560 = vrot.lane.b32.xlu0 %v1543, 2
        %v1561 = vpop.permute.xlu0 %1560
        %v1562 = vsel %vm294, %v1559, %v1561
        %v1563 = vsel %vm294, %v1561, %v1559
        %v1564 = vsel %vm246, %v1563, 0.0
        %v1565 = vsel %vm247, %v1562, 0.0
        %s1566 = sld [smem:[#allocation7 + $0x5c]]
        %v1567 = vstv %s1566
        %v1568 = vmul.f32 %v1567, %v1564
        %v1569 = vmul.f32 %v1567, %v1565
        %v1570 = vadd.f32 %v1556, %v1568
        %v1571 = vadd.f32 %v1557, %v1569
        %1572 = vrot.lane.b32.xlu0 %v1542, 1
        %v1573 = vpop.permute.xlu0 %1572
        %1574 = vrot.lane.b32.xlu0 %v1543, 1
        %v1575 = vpop.permute.xlu0 %1574
        %v1576 = vsel %vm309, %v1573, %v1575
        %v1577 = vsel %vm309, %v1575, %v1573
        %v1578 = vsel %vm250, %v1577, 0.0
        %v1579 = vsel %vm251, %v1576, 0.0
        %s1580 = sld [smem:[#allocation7 + $0x5d]]
        %v1581 = vstv %s1580
        %v1582 = vmul.f32 %v1581, %v1578
        %v1583 = vmul.f32 %v1581, %v1579
        %v1584 = vadd.f32 %v1570, %v1582
        %v1585 = vadd.f32 %v1571, %v1583
        %s1586 = sld [smem:[#allocation7 + $0x5e]]
        %v1587 = vstv %s1586
        %v1588 = vmul.f32 %v1587, %v1542
        %v1589 = vmul.f32 %v1587, %v1543
        %v1590 = vadd.f32 %v1584, %v1588
        %v1591 = vadd.f32 %v1585, %v1589
        %1592 = vrot.lane.b32.xlu0 %v1542, 127
        %v1593 = vpop.permute.xlu0 %1592
        %1594 = vrot.lane.b32.xlu0 %v1543, 127
        %v1595 = vpop.permute.xlu0 %1594
        %v1596 = vsel %vm330, %v1593, %v1595
        %v1597 = vsel %vm330, %v1595, %v1593
        %v1598 = vsel %vm254, %v1596, 0.0
        %v1599 = vsel %vm255, %v1597, 0.0
        %s1600 = sld [smem:[#allocation7 + $0x5f]]
        %v1601 = vstv %s1600
        %v1602 = vmul.f32 %v1601, %v1598
        %v1603 = vmul.f32 %v1601, %v1599
        %v1604 = vadd.f32 %v1590, %v1602
        %v1605 = vadd.f32 %v1591, %v1603
        %1606 = vrot.lane.b32.xlu0 %v1542, 126
        %v1607 = vpop.permute.xlu0 %1606
        %1608 = vrot.lane.b32.xlu0 %v1543, 126
        %v1609 = vpop.permute.xlu0 %1608
        %v1610 = vsel %vm345, %v1607, %v1609
        %v1611 = vsel %vm345, %v1609, %v1607
        %v1612 = vsel %vm258, %v1610, 0.0
        %v1613 = vsel %vm259, %v1611, 0.0
        %s1614 = sld [smem:[#allocation7 + $0x60]]
        %v1615 = vstv %s1614
        %v1616 = vmul.f32 %v1615, %v1612
        %v1617 = vmul.f32 %v1615, %v1613
        %v1618 = vadd.f32 %v1604, %v1616
        %v1619 = vadd.f32 %v1605, %v1617
        %1620 = vrot.lane.b32.xlu0 %v1542, 125
        %v1621 = vpop.permute.xlu0 %1620
        %1622 = vrot.lane.b32.xlu0 %v1543, 125
        %v1623 = vpop.permute.xlu0 %1622
        %v1624 = vsel %vm360, %v1621, %v1623
        %v1625 = vsel %vm360, %v1623, %v1621
        %v1626 = vsel %vm262, %v1624, 0.0
        %v1627 = vsel %vm263, %v1625, 0.0
        %s1628 = sld [smem:[#allocation7 + $0x61]]
        %v1629 = vstv %s1628
        %v1630 = vmul.f32 %v1629, %v1626
        %v1631 = vmul.f32 %v1629, %v1627
        %v1632 = vadd.f32 %v1618, %v1630
        %v1633 = vadd.f32 %v1619, %v1631
        %v1634 = vxor.u32 %v1632, 2147483648
        %v1635 = vxor.u32 %v1633, 2147483648
        %v1636 = vmul.f32 %v1634, 1.442695
        %v1637 = vpow.pop %v1636
        %v1638 = vmul.f32 %v1635, 1.442695
        %v1639 = vpow.pop %v1638
        %v1640 = vadd.f32 %v1637, 1.0
        %v1641 = vadd.f32 %v1639, 1.0
        %v1642 = vrcp.pop %v1640
        %v1643 = vmul.f32 1.0, %v1642
        %v1644 = vrcp.pop %v1641
        %v1645 = vmul.f32 1.0, %v1644
        %v1646 = vlaneseq
        %v1647 = vshrl.u32 %v1646, 7
        %v1648 = vsub.s32 0, %v1647
        %v1649 = vrot.slane %v1643, %v1648
        %v1650 = vlaneseq
        %v1651 = vshrl.u32 %v1650, 7
        %v1652 = vsub.s32 0, %v1651
        %v1653 = vrot.slane %v1645, %v1652
        %v1656 = vcombine.low %v1649, %v1653
        %v1658 = vmul.f32 %v202, %v1656
        %1659 = vst [vmem:[%s201] sm:$0xff] %v1658
        %s1660 = sand.u32 %s98, 1
        %s1661 = scalar_lea.sflag [#allocation5], %s1660
        %s1662 = sand.u32 %s98, 1
        %s1663 = smul.addr %s1662, 8
        %s1664 = scalar_lea.vmem [#allocation8], %s1663
        // Predicated region
        $region41: #{tpu_custom_call.1} parent=31 // pred_check
          %p1665 = pneg %p108
        $region42: #{tpu_custom_call.1} parent=31 // pred_check_branch
          %1667 = sbr.rel (%p1665) target = $region44
        $region43: #{tpu_custom_call.1} parent=31 // pred_region
          %s1669 = ssub.s32 128, 128
          %1670 = vsyncadd %s1661, %s1669
          %s1671 = smul.addr %s22, 2
          %s1672 = smul.addr %s1671, 64
          %s1673 = scalar_lea.hbm %s3, %s1672
          %s1675 = sshll.u32 %s1664, 4
          %s1676 = int_to_ptr.vmem [resolvable:$true] %s1675
          %1678 = dma.vmem_to_hbm [thread:$0]  %s1676, 128, %s1673, %s1661
        $region44: #{tpu_custom_call.1} parent=31 // pred_fallthru
          _
      $region32: #{tpu_custom_call.1} parent=5 // pred_fallthru
        _
      %p1679 = scmp.le.s32.totalorder 2, %s17
      // Predicated region
      $region45: #{tpu_custom_call.1} parent=5 // pred_check
        %p1680 = pneg %p1679
      $region46: #{tpu_custom_call.1} parent=5 // pred_check_branch
        %1682 = sbr.rel (%p1680) target = $region48
      $region47: #{tpu_custom_call.1} parent=5 // pred_region
        %s1683 = ssub.s32 %s17, 2
        // Predicated region
        $region49: #{tpu_custom_call.1} parent=47 // pred_check
          %p1684 = pneg %p114
        $region50: #{tpu_custom_call.1} parent=47 // pred_check_branch
          %1686 = sbr.rel (%p1684) target = $region52
        $region51: #{tpu_custom_call.1} parent=47 // pred_region
          %s1687 = sand.u32 %s99, 1
          %s1688 = scalar_lea.sflag [#allocation5], %s1687
          %s1689 = sand.u32 %s99, 1
          %s1690 = smul.addr %s1689, 8
          %s1691 = scalar_lea.vmem [#allocation8], %s1690
          %1692 = dma.done %s1688, 128
        $region52: #{tpu_custom_call.1} parent=47 // pred_fallthru
          _
      $region48: #{tpu_custom_call.1} parent=5 // pred_fallthru
        _
    $region6: #{tpu_custom_call.1} parent=1 // loop_footer
      %s21 = sadd.s32 1, %s17
    $region7: #{tpu_custom_call.1} parent=1 // loop_footer_branch
      %16 = sbr.rel target = $region3
    $region8: #{tpu_custom_call.1} parent=1 // loop_exit
      _
    %1693 = vsyncpa [#allocation4], 1
    %s1694 = scalar_lea.sflag [#allocation4], 1
    %1695 = vsyncpa %s1694, 1
    %1696 = vsyncpa [#allocation5], 1
    %s1697 = scalar_lea.sflag [#allocation5], 1
    %1698 = vsyncpa %s1697, 1
    %1699 = vsyncpa [#allocation6], 1
    %s1700 = scalar_lea.sflag [#allocation6], 1
    %1701 = vsyncpa %s1700, 1

</llo_original>
